<compile_context>
chip_gen: v5e
topology: v5e:2x2
jax: 0.10.0
libtpu: 0.0.40
codegen_flags: <defaults>
</compile_context>

<pallas_src>
import jax
import jax.numpy as jnp
from jax.experimental import pallas as pl
from jax.experimental.pallas import tpu as pltpu


def _round_up(x, m):
    return ((x + m - 1) // m) * m


# ------------------------------------------------------------------
# Pallas kernels
# ------------------------------------------------------------------
def _conv_pool_kernel(w_ref, b_ref, p0_ref, p1_ref, p2_ref, p3_ref, o_ref):
    """Fused conv(+bias)+ReLU+MaxPool2d(2,2) on one column tile.

    w : (Cout_pad, K_pad)   conv weight (rows = out channel)
    b : (Cout_pad, 1)       bias
    p*: (K_pad, TN)         im2col patches of the 4 pool-window corners
    o : (Cout_pad, TN)      pooled activations (large, lane-dense last dim)

    max_c relu(W@P_c + b) == relu(max_c(W@P_c) + b)  (shared bias, relu monotone)
    """
    w = w_ref[...]
    m0 = jnp.dot(w, p0_ref[...], preferred_element_type=jnp.float32)
    m1 = jnp.dot(w, p1_ref[...], preferred_element_type=jnp.float32)
    m2 = jnp.dot(w, p2_ref[...], preferred_element_type=jnp.float32)
    m3 = jnp.dot(w, p3_ref[...], preferred_element_type=jnp.float32)
    acc = jnp.maximum(jnp.maximum(m0, m1), jnp.maximum(m2, m3))
    o_ref[...] = jnp.maximum(acc + b_ref[...], 0.0)


def _fc_fc_kernel(x_ref, w1_ref, b1_ref, w2_ref, b2_ref, o_ref):
    """Fused fc1+ReLU+fc2+ReLU; the (H1, TB) intermediate never leaves VMEM.

    x : (F, TB)   flattened features, PyTorch .view(-1, F) order per column
    w1: (H1, F)   b1: (H1, 1)   w2: (H2, H1)   b2: (H2, 1)   o: (H2, TB)
    """
    h = jnp.dot(w1_ref[...], x_ref[...], preferred_element_type=jnp.float32)
    h = jnp.maximum(h + b1_ref[...], 0.0)
    y = jnp.dot(w2_ref[...], h, preferred_element_type=jnp.float32)
    o_ref[...] = jnp.maximum(y + b2_ref[...], 0.0)


# ------------------------------------------------------------------
# pallas_call wrappers
# ------------------------------------------------------------------
def conv_relu_pool(w, b, pmats, tile_n=512):
    """w: (Cout_pad, K_pad), b: (Cout_pad, 1), pmats: 4 x (K_pad, N)
    -> (Cout_pad, N) pooled+ReLU'd activations."""
    cout, kp = w.shape
    n = pmats[0].shape[1]
    tn = n if n <= tile_n else tile_n           # full dim, or 128-multiple tile
    grid = (pl.cdiv(n, tn),)
    return pl.pallas_call(
        _conv_pool_kernel,
        out_shape=jax.ShapeDtypeStruct((cout, n), jnp.float32),
        grid=grid,
        in_specs=[
            pl.BlockSpec((cout, kp), lambda i: (0, 0)),
            pl.BlockSpec((cout, 1), lambda i: (0, 0)),
            pl.BlockSpec((kp, tn), lambda i: (0, i)),
            pl.BlockSpec((kp, tn), lambda i: (0, i)),
            pl.BlockSpec((kp, tn), lambda i: (0, i)),
            pl.BlockSpec((kp, tn), lambda i: (0, i)),
        ],
        out_specs=pl.BlockSpec((cout, tn), lambda i: (0, i)),
        compiler_params=pltpu.CompilerParams(
            dimension_semantics=("parallel",)),
    )(w, b, *pmats)


def fc_relu_fc_relu(x_fc, w1, b1, w2, b2, tile_b=512):
    """x_fc: (F, B) -> (H2, B) = relu(W2 @ relu(W1 @ x + b1) + b2)."""
    f, bsz = x_fc.shape
    h1 = w1.shape[0]
    h2 = w2.shape[0]
    tb = bsz if bsz <= tile_b else tile_b
    grid = (pl.cdiv(bsz, tb),)
    return pl.pallas_call(
        _fc_fc_kernel,
        out_shape=jax.ShapeDtypeStruct((h2, bsz), jnp.float32),
        grid=grid,
        in_specs=[
            pl.BlockSpec((f, tb), lambda i: (0, i)),
            pl.BlockSpec((h1, f), lambda i: (0, 0)),
            pl.BlockSpec((h1, 1), lambda i: (0, 0)),
            pl.BlockSpec((h2, h1), lambda i: (0, 0)),
            pl.BlockSpec((h2, 1), lambda i: (0, 0)),
        ],
        out_specs=pl.BlockSpec((h2, tb), lambda i: (0, i)),
        compiler_params=pltpu.CompilerParams(
            dimension_semantics=("parallel",)),
    )(x_fc, w1, b1, w2, b2)


# ------------------------------------------------------------------
# im2col glue (plain JAX; feeds the fused kernels)
# ------------------------------------------------------------------
def _pad_rows(m, align=8):
    k = m.shape[0]
    kp = _round_up(k, align)
    if kp == k:
        return m
    return jnp.pad(m, ((0, kp - k), (0, 0)))


def _pool_corner_patches_nchw(x, kh, kw):
    """x: (B, C, H, W). Returns 4 patch matrices (K=C*kh*kw, B*OH2*OW2),
    one per 2x2-pool corner; rows ordered (c, i, j), cols ordered (b, h2, w2)."""
    B, C, H, W = x.shape
    OH, OW = H - kh + 1, W - kw + 1
    OH2, OW2 = OH // 2, OW // 2
    mats = []
    for py in range(2):
        for px in range(2):
            views = []
            for i in range(kh):
                for j in range(kw):
                    v = x[:, :, i:i + OH, j:j + OW]                    # (B,C,OH,OW)
                    v = v[:, :, py::2, px::2][:, :, :OH2, :OW2]        # (B,C,OH2,OW2)
                    views.append(v)
            p = jnp.stack(views, 0).reshape(kh, kw, B, C, OH2, OW2)
            p = p.transpose(3, 0, 1, 2, 4, 5)                          # (C,kh,kw,B,OH2,OW2)
            mats.append(p.reshape(C * kh * kw, B * OH2 * OW2))
    return mats, OH2, OW2


def _pool_corner_patches_cbhw(x, kh, kw):
    """x: (C, B, H, W). Returns 4 patch matrices (K=C*kh*kw, OH2*OW2*B),
    rows ordered (c, i, j), cols ordered (h2, w2, b)."""
    C, B, H, W = x.shape
    OH, OW = H - kh + 1, W - kw + 1
    OH2, OW2 = OH // 2, OW // 2
    mats = []
    for py in range(2):
        for px in range(2):
            views = []
            for i in range(kh):
                for j in range(kw):
                    v = x[:, :, i:i + OH, j:j + OW]                    # (C,B,OH,OW)
                    v = v[:, :, py::2, px::2][:, :, :OH2, :OW2]        # (C,B,OH2,OW2)
                    views.append(v)
            p = jnp.stack(views, 0).reshape(kh, kw, C, B, OH2, OW2)
            p = p.transpose(2, 0, 1, 4, 5, 3)                          # (C,kh,kw,OH2,OW2,B)
            mats.append(p.reshape(C * kh * kw, OH2 * OW2 * B))
    return mats, OH2, OW2


# ------------------------------------------------------------------
# Parameters (PyTorch layout) and one-time kernel-layout preparation
# ------------------------------------------------------------------
def init_params(key, input_dim=400, hidden_dims=(120, 84)):
    ks = jax.random.split(key, 8)
    scale = 0.1
    return {
        "conv1_w": scale * jax.random.normal(ks[0], (6, 3, 5, 5), jnp.float32),
        "conv1_b": scale * jax.random.normal(ks[1], (6,), jnp.float32),
        "conv2_w": scale * jax.random.normal(ks[2], (16, 6, 5, 5), jnp.float32),
        "conv2_b": scale * jax.random.normal(ks[3], (16,), jnp.float32),
        "fc1_w": scale * jax.random.normal(ks[4], (hidden_dims[0], input_dim), jnp.float32),
        "fc1_b": scale * jax.random.normal(ks[5], (hidden_dims[0],), jnp.float32),
        "fc2_w": scale * jax.random.normal(ks[6], (hidden_dims[1], hidden_dims[0]), jnp.float32),
        "fc2_b": scale * jax.random.normal(ks[7], (hidden_dims[1],), jnp.float32),
    }


def prepare_params(params):
    """One-time (outside jit) re-layout: reshape conv weights to matmul form,
    zero-pad Cout/K to sublane-aligned sizes, reshape biases to (C, 1)."""
    c1w = params["conv1_w"].reshape(6, 3 * 5 * 5)            # (6, 75)
    c1w = jnp.pad(c1w, ((0, _round_up(6, 8) - 6),
                        (0, _round_up(75, 8) - 75)))          # (8, 80)
    c1b = jnp.pad(params["conv1_b"], (0, _round_up(6, 8) - 6)).reshape(-1, 1)
    c2w = params["conv2_w"].reshape(16, 6 * 5 * 5)            # (16, 150)
    c2w = jnp.pad(c2w, ((0, 0), (0, _round_up(150, 8) - 150)))  # (16, 152)
    c2b = params["conv2_b"].reshape(-1, 1)
    return {
        "c1w": c1w, "c1b": c1b,
        "c2w": c2w, "c2b": c2b,
        "fc1_w": params["fc1_w"], "fc1_b": params["fc1_b"].reshape(-1, 1),
        "fc2_w": params["fc2_w"], "fc2_b": params["fc2_b"].reshape(-1, 1),
    }


# ------------------------------------------------------------------
# SimpleCNN_header forward
# ------------------------------------------------------------------
def simple_cnn_header_forward(kp, x):
    """x: (B, 3, 32, 32) NCHW f32 -> (B, 84) f32 (matches PyTorch module)."""
    B = x.shape[0]

    # Stage 1: conv1(3->6,5x5) + ReLU + pool, fused. Output (8, B*14*14),
    # columns ordered (b, h, w); rows 6..7 are zero padding.
    mats1, h2, w2 = _pool_corner_patches_nchw(x, 5, 5)
    mats1 = [_pad_rows(m) for m in mats1]                     # (80, B*196)
    out1 = conv_relu_pool(kp["c1w"], kp["c1b"], mats1)        # (8, B*196)
    f1 = out1.reshape(8, B, h2, w2)[:6]                       # (6, B, 14, 14)

    # Stage 2: conv2(6->16,5x5) + ReLU + pool, fused. Output (16, 5*5*B),
    # columns ordered (h, w, b).
    mats2, h3, w3 = _pool_corner_patches_cbhw(f1, 5, 5)
    mats2 = [_pad_rows(m) for m in mats2]                     # (152, 25*B)
    out2 = conv_relu_pool(kp["c2w"], kp["c2b"], mats2)        # (16, 25*B)

    # Flatten: row-major reshape gives exactly PyTorch .view(-1, 16*5*5)
    # order (c*25 + h*5 + w) per column (= per sample). No transpose needed.
    x_fc = out2.reshape(16 * h3 * w3, B)                      # (400, B)

    # fc1 + ReLU + fc2 + ReLU, fused in one kernel.
    y = fc_relu_fc_relu(x_fc, kp["fc1_w"], kp["fc1_b"],
                        kp["fc2_w"], kp["fc2_b"])             # (84, B)
    return y.T                                                # (B, 84)


if __name__ == "__main__":
    key = jax.random.PRNGKey(0)
    k_params, k_x = jax.random.split(key)

    input_dim = 400            # 16*5*5  =>  32x32 spatial input (CIFAR-like)
    hidden_dims = (120, 84)
    params = init_params(k_params, input_dim, hidden_dims)
    kparams = prepare_params(params)   # one-time weight re-layout, outside jit

    batch = 2
    x = jax.random.normal(k_x, (batch, 3, 32, 32), jnp.float32)

    fwd = jax.jit(simple_cnn_header_forward)
    out = fwd(kparams, x)
    out = jax.block_until_ready(out)

    assert out.shape == (batch, hidden_dims[1]), out.shape
    assert out.dtype == jnp.float32
    assert bool(jnp.all(out >= 0.0))   # ReLU output
    assert bool(jnp.all(jnp.isfinite(out)))
    print("KERNEL_OK")
</pallas_src>

<mosaic_0001>
module attributes {stable_mosaic.version = 11 : i64} {
  func.func @_conv_pool_kernel(%arg0: i32, %arg1: memref<8x80xf32, #tpu.memory_space<vmem>>, %arg2: memref<8x1xf32, #tpu.memory_space<vmem>>, %arg3: memref<80x392xf32, #tpu.memory_space<vmem>>, %arg4: memref<80x392xf32, #tpu.memory_space<vmem>>, %arg5: memref<80x392xf32, #tpu.memory_space<vmem>>, %arg6: memref<80x392xf32, #tpu.memory_space<vmem>>, %arg7: memref<8x392xf32, #tpu.memory_space<vmem>>) attributes {dimension_semantics = [#tpu.dimension_semantics<parallel>], iteration_bounds = array<i64: 1>, scalar_prefetch = 0 : i64, scratch_operands = 0 : i64, tpu.core_type = #tpu.core_type<tc>, window_params = [{pipeline_mode = #tpu.pipeline_mode<synchronous>, transform_indices = @transform_0, window_bounds = array<i64: 8, 80>}, {pipeline_mode = #tpu.pipeline_mode<synchronous>, transform_indices = @transform_1, window_bounds = array<i64: 8, 1>}, {transform_indices = @transform_2, window_bounds = array<i64: 80, 392>}, {transform_indices = @transform_3, window_bounds = array<i64: 80, 392>}, {transform_indices = @transform_4, window_bounds = array<i64: 80, 392>}, {transform_indices = @transform_5, window_bounds = array<i64: 80, 392>}, {transform_indices = @transform_6, window_bounds = array<i64: 8, 392>}]} {
    %c0 = arith.constant 0 : index
    %c0_0 = arith.constant 0 : index
    %0 = vector.load %arg1[%c0, %c0_0] : memref<8x80xf32, #tpu.memory_space<vmem>>, vector<8x80xf32>
    %c0_1 = arith.constant 0 : index
    %c0_2 = arith.constant 0 : index
    %1 = vector.load %arg3[%c0_1, %c0_2] : memref<80x392xf32, #tpu.memory_space<vmem>>, vector<80x392xf32>
    %cst = arith.constant dense<0.000000e+00> : vector<8x392xf32>
    %2 = tpu.matmul %0, %1, %cst {dimension_numbers = #tpu.dot_dimension_numbers<[1], [0], [0], [1], [0, 0, 1, 1], [], []>} : vector<8x80xf32>, vector<80x392xf32>, vector<8x392xf32> -> vector<8x392xf32>
    %c0_3 = arith.constant 0 : index
    %c0_4 = arith.constant 0 : index
    %3 = vector.load %arg4[%c0_3, %c0_4] : memref<80x392xf32, #tpu.memory_space<vmem>>, vector<80x392xf32>
    %cst_5 = arith.constant dense<0.000000e+00> : vector<8x392xf32>
    %4 = tpu.matmul %0, %3, %cst_5 {dimension_numbers = #tpu.dot_dimension_numbers<[1], [0], [0], [1], [0, 0, 1, 1], [], []>} : vector<8x80xf32>, vector<80x392xf32>, vector<8x392xf32> -> vector<8x392xf32>
    %c0_6 = arith.constant 0 : index
    %c0_7 = arith.constant 0 : index
    %5 = vector.load %arg5[%c0_6, %c0_7] : memref<80x392xf32, #tpu.memory_space<vmem>>, vector<80x392xf32>
    %cst_8 = arith.constant dense<0.000000e+00> : vector<8x392xf32>
    %6 = tpu.matmul %0, %5, %cst_8 {dimension_numbers = #tpu.dot_dimension_numbers<[1], [0], [0], [1], [0, 0, 1, 1], [], []>} : vector<8x80xf32>, vector<80x392xf32>, vector<8x392xf32> -> vector<8x392xf32>
    %c0_9 = arith.constant 0 : index
    %c0_10 = arith.constant 0 : index
    %7 = vector.load %arg6[%c0_9, %c0_10] : memref<80x392xf32, #tpu.memory_space<vmem>>, vector<80x392xf32>
    %cst_11 = arith.constant dense<0.000000e+00> : vector<8x392xf32>
    %8 = tpu.matmul %0, %7, %cst_11 {dimension_numbers = #tpu.dot_dimension_numbers<[1], [0], [0], [1], [0, 0, 1, 1], [], []>} : vector<8x80xf32>, vector<80x392xf32>, vector<8x392xf32> -> vector<8x392xf32>
    %9 = arith.maximumf %2, %4 : vector<8x392xf32>
    %10 = arith.maximumf %6, %8 : vector<8x392xf32>
    %11 = arith.maximumf %9, %10 : vector<8x392xf32>
    %c0_12 = arith.constant 0 : index
    %c0_13 = arith.constant 0 : index
    %12 = vector.load %arg2[%c0_12, %c0_13] : memref<8x1xf32, #tpu.memory_space<vmem>>, vector<8x1xf32>
    %13 = vector.broadcast %12 : vector<8x1xf32> to vector<8x392xf32>
    %14 = arith.addf %11, %13 : vector<8x392xf32>
    %cst_14 = arith.constant 0.000000e+00 : f32
    %15 = vector.broadcast %cst_14 : f32 to vector<8x392xf32>
    %16 = arith.maximumf %14, %15 : vector<8x392xf32>
    %c0_15 = arith.constant 0 : index
    %c0_16 = arith.constant 0 : index
    %17 = vector.load %arg7[%c0_15, %c0_16] : memref<8x392xf32, #tpu.memory_space<vmem>>, vector<8x392xf32>
    tpu.vector_store %arg7[%c0_15, %c0_16], %16 {strides = array<i32>} : memref<8x392xf32, #tpu.memory_space<vmem>>, vector<8x392xf32>,
    return
  }
  func.func @transform_0(%arg0: i32) -> (i32, i32) {
    %c0_i32 = arith.constant 0 : i32
    %c0_i32_0 = arith.constant 0 : i32
    %c0_i32_1 = arith.constant 0 : i32
    return %c0_i32, %c0_i32_0 : i32, i32
  }
  func.func @transform_1(%arg0: i32) -> (i32, i32) {
    %c0_i32 = arith.constant 0 : i32
    %c0_i32_0 = arith.constant 0 : i32
    %c0_i32_1 = arith.constant 0 : i32
    return %c0_i32, %c0_i32_0 : i32, i32
  }
  func.func @transform_2(%arg0: i32) -> (i32, i32) {
    %c0_i32 = arith.constant 0 : i32
    %c0_i32_0 = arith.constant 0 : i32
    return %c0_i32, %arg0 : i32, i32
  }
  func.func @transform_3(%arg0: i32) -> (i32, i32) {
    %c0_i32 = arith.constant 0 : i32
    %c0_i32_0 = arith.constant 0 : i32
    return %c0_i32, %arg0 : i32, i32
  }
  func.func @transform_4(%arg0: i32) -> (i32, i32) {
    %c0_i32 = arith.constant 0 : i32
    %c0_i32_0 = arith.constant 0 : i32
    return %c0_i32, %arg0 : i32, i32
  }
  func.func @transform_5(%arg0: i32) -> (i32, i32) {
    %c0_i32 = arith.constant 0 : i32
    %c0_i32_0 = arith.constant 0 : i32
    return %c0_i32, %arg0 : i32, i32
  }
  func.func @transform_6(%arg0: i32) -> (i32, i32) {
    %c0_i32 = arith.constant 0 : i32
    %c0_i32_0 = arith.constant 0 : i32
    return %c0_i32, %arg0 : i32, i32
  }
}

module attributes {stable_mosaic.version = 11 : i64} {
  func.func @_conv_pool_kernel(%arg0: i32, %arg1: memref<16x152xf32, #tpu.memory_space<vmem>>, %arg2: memref<16x1xf32, #tpu.memory_space<vmem>>, %arg3: memref<152x50xf32, #tpu.memory_space<vmem>>, %arg4: memref<152x50xf32, #tpu.memory_space<vmem>>, %arg5: memref<152x50xf32, #tpu.memory_space<vmem>>, %arg6: memref<152x50xf32, #tpu.memory_space<vmem>>, %arg7: memref<16x50xf32, #tpu.memory_space<vmem>>) attributes {dimension_semantics = [#tpu.dimension_semantics<parallel>], iteration_bounds = array<i64: 1>, scalar_prefetch = 0 : i64, scratch_operands = 0 : i64, tpu.core_type = #tpu.core_type<tc>, window_params = [{pipeline_mode = #tpu.pipeline_mode<synchronous>, transform_indices = @transform_0, window_bounds = array<i64: 16, 152>}, {pipeline_mode = #tpu.pipeline_mode<synchronous>, transform_indices = @transform_1, window_bounds = array<i64: 16, 1>}, {transform_indices = @transform_2, window_bounds = array<i64: 152, 50>}, {transform_indices = @transform_3, window_bounds = array<i64: 152, 50>}, {transform_indices = @transform_4, window_bounds = array<i64: 152, 50>}, {transform_indices = @transform_5, window_bounds = array<i64: 152, 50>}, {transform_indices = @transform_6, window_bounds = array<i64: 16, 50>}]} {
    %c0 = arith.constant 0 : index
    %c0_0 = arith.constant 0 : index
    %0 = vector.load %arg1[%c0, %c0_0] : memref<16x152xf32, #tpu.memory_space<vmem>>, vector<16x152xf32>
    %c0_1 = arith.constant 0 : index
    %c0_2 = arith.constant 0 : index
    %1 = vector.load %arg3[%c0_1, %c0_2] : memref<152x50xf32, #tpu.memory_space<vmem>>, vector<152x50xf32>
    %cst = arith.constant dense<0.000000e+00> : vector<16x50xf32>
    %2 = tpu.matmul %0, %1, %cst {dimension_numbers = #tpu.dot_dimension_numbers<[1], [0], [0], [1], [0, 0, 1, 1], [], []>} : vector<16x152xf32>, vector<152x50xf32>, vector<16x50xf32> -> vector<16x50xf32>
    %c0_3 = arith.constant 0 : index
    %c0_4 = arith.constant 0 : index
    %3 = vector.load %arg4[%c0_3, %c0_4] : memref<152x50xf32, #tpu.memory_space<vmem>>, vector<152x50xf32>
    %cst_5 = arith.constant dense<0.000000e+00> : vector<16x50xf32>
    %4 = tpu.matmul %0, %3, %cst_5 {dimension_numbers = #tpu.dot_dimension_numbers<[1], [0], [0], [1], [0, 0, 1, 1], [], []>} : vector<16x152xf32>, vector<152x50xf32>, vector<16x50xf32> -> vector<16x50xf32>
    %c0_6 = arith.constant 0 : index
    %c0_7 = arith.constant 0 : index
    %5 = vector.load %arg5[%c0_6, %c0_7] : memref<152x50xf32, #tpu.memory_space<vmem>>, vector<152x50xf32>
    %cst_8 = arith.constant dense<0.000000e+00> : vector<16x50xf32>
    %6 = tpu.matmul %0, %5, %cst_8 {dimension_numbers = #tpu.dot_dimension_numbers<[1], [0], [0], [1], [0, 0, 1, 1], [], []>} : vector<16x152xf32>, vector<152x50xf32>, vector<16x50xf32> -> vector<16x50xf32>
    %c0_9 = arith.constant 0 : index
    %c0_10 = arith.constant 0 : index
    %7 = vector.load %arg6[%c0_9, %c0_10] : memref<152x50xf32, #tpu.memory_space<vmem>>, vector<152x50xf32>
    %cst_11 = arith.constant dense<0.000000e+00> : vector<16x50xf32>
    %8 = tpu.matmul %0, %7, %cst_11 {dimension_numbers = #tpu.dot_dimension_numbers<[1], [0], [0], [1], [0, 0, 1, 1], [], []>} : vector<16x152xf32>, vector<152x50xf32>, vector<16x50xf32> -> vector<16x50xf32>
    %9 = arith.maximumf %2, %4 : vector<16x50xf32>
    %10 = arith.maximumf %6, %8 : vector<16x50xf32>
    %11 = arith.maximumf %9, %10 : vector<16x50xf32>
    %c0_12 = arith.constant 0 : index
    %c0_13 = arith.constant 0 : index
    %12 = vector.load %arg2[%c0_12, %c0_13] : memref<16x1xf32, #tpu.memory_space<vmem>>, vector<16x1xf32>
    %13 = vector.broadcast %12 : vector<16x1xf32> to vector<16x50xf32>
    %14 = arith.addf %11, %13 : vector<16x50xf32>
    %cst_14 = arith.constant 0.000000e+00 : f32
    %15 = vector.broadcast %cst_14 : f32 to vector<16x50xf32>
    %16 = arith.maximumf %14, %15 : vector<16x50xf32>
    %c0_15 = arith.constant 0 : index
    %c0_16 = arith.constant 0 : index
    %17 = vector.load %arg7[%c0_15, %c0_16] : memref<16x50xf32, #tpu.memory_space<vmem>>, vector<16x50xf32>
    tpu.vector_store %arg7[%c0_15, %c0_16], %16 {strides = array<i32>} : memref<16x50xf32, #tpu.memory_space<vmem>>, vector<16x50xf32>,
    return
  }
  func.func @transform_0(%arg0: i32) -> (i32, i32) {
    %c0_i32 = arith.constant 0 : i32
    %c0_i32_0 = arith.constant 0 : i32
    %c0_i32_1 = arith.constant 0 : i32
    return %c0_i32, %c0_i32_0 : i32, i32
  }
  func.func @transform_1(%arg0: i32) -> (i32, i32) {
    %c0_i32 = arith.constant 0 : i32
    %c0_i32_0 = arith.constant 0 : i32
    %c0_i32_1 = arith.constant 0 : i32
    return %c0_i32, %c0_i32_0 : i32, i32
  }
  func.func @transform_2(%arg0: i32) -> (i32, i32) {
    %c0_i32 = arith.constant 0 : i32
    %c0_i32_0 = arith.constant 0 : i32
    return %c0_i32, %arg0 : i32, i32
  }
  func.func @transform_3(%arg0: i32) -> (i32, i32) {
    %c0_i32 = arith.constant 0 : i32
    %c0_i32_0 = arith.constant 0 : i32
    return %c0_i32, %arg0 : i32, i32
  }
  func.func @transform_4(%arg0: i32) -> (i32, i32) {
    %c0_i32 = arith.constant 0 : i32
    %c0_i32_0 = arith.constant 0 : i32
    return %c0_i32, %arg0 : i32, i32
  }
  func.func @transform_5(%arg0: i32) -> (i32, i32) {
    %c0_i32 = arith.constant 0 : i32
    %c0_i32_0 = arith.constant 0 : i32
    return %c0_i32, %arg0 : i32, i32
  }
  func.func @transform_6(%arg0: i32) -> (i32, i32) {
    %c0_i32 = arith.constant 0 : i32
    %c0_i32_0 = arith.constant 0 : i32
    return %c0_i32, %arg0 : i32, i32
  }
}

module attributes {stable_mosaic.version = 11 : i64} {
  func.func @_fc_fc_kernel(%arg0: i32, %arg1: memref<400x2xf32, #tpu.memory_space<vmem>>, %arg2: memref<120x400xf32, #tpu.memory_space<vmem>>, %arg3: memref<120x1xf32, #tpu.memory_space<vmem>>, %arg4: memref<84x120xf32, #tpu.memory_space<vmem>>, %arg5: memref<84x1xf32, #tpu.memory_space<vmem>>, %arg6: memref<84x2xf32, #tpu.memory_space<vmem>>) attributes {dimension_semantics = [#tpu.dimension_semantics<parallel>], iteration_bounds = array<i64: 1>, scalar_prefetch = 0 : i64, scratch_operands = 0 : i64, tpu.core_type = #tpu.core_type<tc>, window_params = [{transform_indices = @transform_0, window_bounds = array<i64: 400, 2>}, {pipeline_mode = #tpu.pipeline_mode<synchronous>, transform_indices = @transform_1, window_bounds = array<i64: 120, 400>}, {pipeline_mode = #tpu.pipeline_mode<synchronous>, transform_indices = @transform_2, window_bounds = array<i64: 120, 1>}, {pipeline_mode = #tpu.pipeline_mode<synchronous>, transform_indices = @transform_3, window_bounds = array<i64: 84, 120>}, {pipeline_mode = #tpu.pipeline_mode<synchronous>, transform_indices = @transform_4, window_bounds = array<i64: 84, 1>}, {transform_indices = @transform_5, window_bounds = array<i64: 84, 2>}]} {
    %c0 = arith.constant 0 : index
    %c0_0 = arith.constant 0 : index
    %0 = vector.load %arg2[%c0, %c0_0] : memref<120x400xf32, #tpu.memory_space<vmem>>, vector<120x400xf32>
    %c0_1 = arith.constant 0 : index
    %c0_2 = arith.constant 0 : index
    %1 = vector.load %arg1[%c0_1, %c0_2] : memref<400x2xf32, #tpu.memory_space<vmem>>, vector<400x2xf32>
    %cst = arith.constant dense<0.000000e+00> : vector<120x2xf32>
    %2 = tpu.matmul %0, %1, %cst {dimension_numbers = #tpu.dot_dimension_numbers<[1], [0], [0], [1], [0, 0, 1, 1], [], []>} : vector<120x400xf32>, vector<400x2xf32>, vector<120x2xf32> -> vector<120x2xf32>
    %c0_3 = arith.constant 0 : index
    %c0_4 = arith.constant 0 : index
    %3 = vector.load %arg3[%c0_3, %c0_4] : memref<120x1xf32, #tpu.memory_space<vmem>>, vector<120x1xf32>
    %4 = vector.broadcast %3 : vector<120x1xf32> to vector<120x2xf32>
    %5 = arith.addf %2, %4 : vector<120x2xf32>
    %cst_5 = arith.constant 0.000000e+00 : f32
    %6 = vector.broadcast %cst_5 : f32 to vector<120x2xf32>
    %7 = arith.maximumf %5, %6 : vector<120x2xf32>
    %c0_6 = arith.constant 0 : index
    %c0_7 = arith.constant 0 : index
    %8 = vector.load %arg4[%c0_6, %c0_7] : memref<84x120xf32, #tpu.memory_space<vmem>>, vector<84x120xf32>
    %cst_8 = arith.constant dense<0.000000e+00> : vector<84x2xf32>
    %9 = tpu.matmul %8, %7, %cst_8 {dimension_numbers = #tpu.dot_dimension_numbers<[1], [0], [0], [1], [0, 0, 1, 1], [], []>} : vector<84x120xf32>, vector<120x2xf32>, vector<84x2xf32> -> vector<84x2xf32>
    %c0_9 = arith.constant 0 : index
    %c0_10 = arith.constant 0 : index
    %10 = vector.load %arg5[%c0_9, %c0_10] : memref<84x1xf32, #tpu.memory_space<vmem>>, vector<84x1xf32>
    %11 = vector.broadcast %10 : vector<84x1xf32> to vector<84x2xf32>
    %12 = arith.addf %9, %11 : vector<84x2xf32>
    %cst_11 = arith.constant 0.000000e+00 : f32
    %13 = vector.broadcast %cst_11 : f32 to vector<84x2xf32>
    %14 = arith.maximumf %12, %13 : vector<84x2xf32>
    %c0_12 = arith.constant 0 : index
    %c0_13 = arith.constant 0 : index
    %15 = vector.load %arg6[%c0_12, %c0_13] : memref<84x2xf32, #tpu.memory_space<vmem>>, vector<84x2xf32>
    tpu.vector_store %arg6[%c0_12, %c0_13], %14 {strides = array<i32>} : memref<84x2xf32, #tpu.memory_space<vmem>>, vector<84x2xf32>,
    return
  }
  func.func @transform_0(%arg0: i32) -> (i32, i32) {
    %c0_i32 = arith.constant 0 : i32
    %c0_i32_0 = arith.constant 0 : i32
    return %c0_i32, %arg0 : i32, i32
  }
  func.func @transform_1(%arg0: i32) -> (i32, i32) {
    %c0_i32 = arith.constant 0 : i32
    %c0_i32_0 = arith.constant 0 : i32
    %c0_i32_1 = arith.constant 0 : i32
    return %c0_i32, %c0_i32_0 : i32, i32
  }
  func.func @transform_2(%arg0: i32) -> (i32, i32) {
    %c0_i32 = arith.constant 0 : i32
    %c0_i32_0 = arith.constant 0 : i32
    %c0_i32_1 = arith.constant 0 : i32
    return %c0_i32, %c0_i32_0 : i32, i32
  }
  func.func @transform_3(%arg0: i32) -> (i32, i32) {
    %c0_i32 = arith.constant 0 : i32
    %c0_i32_0 = arith.constant 0 : i32
    %c0_i32_1 = arith.constant 0 : i32
    return %c0_i32, %c0_i32_0 : i32, i32
  }
  func.func @transform_4(%arg0: i32) -> (i32, i32) {
    %c0_i32 = arith.constant 0 : i32
    %c0_i32_0 = arith.constant 0 : i32
    %c0_i32_1 = arith.constant 0 : i32
    return %c0_i32, %c0_i32_0 : i32, i32
  }
  func.func @transform_5(%arg0: i32) -> (i32, i32) {
    %c0_i32 = arith.constant 0 : i32
    %c0_i32_0 = arith.constant 0 : i32
    return %c0_i32, %arg0 : i32, i32
  }
}

</mosaic_0001>

<llo_original>
// kernel: simple_cnn_header_forward.3
$region0: #{simple_cnn_header_forward.3}
  #allocation0 [shape = 'u32[]', space=smem, size = 0x4, offset = 0x4, fixed_abs, tag = 'smem constant byte address 0x4 - core index']
  #allocation1 [shape = 'u32[72,128]{1,0:T(1,128)}', space=vmem, size = 0x9000, scoped, tag = 'internal scratch']
  %s0 = inlined_call_operand.vmem [shape: f32[8,80], index: 0, kind: input, shape index: {}]
  %s1 = inlined_call_operand.vmem [shape: f32[8,1], index: 1, kind: input, shape index: {}]
  %s2 = inlined_call_operand.vmem [shape: f32[80,392], index: 2, kind: input, shape index: {}]
  %s3 = inlined_call_operand.vmem [shape: f32[80,392], index: 3, kind: input, shape index: {}]
  %s4 = inlined_call_operand.vmem [shape: f32[80,392], index: 4, kind: input, shape index: {}]
  %s5 = inlined_call_operand.vmem [shape: f32[80,392], index: 5, kind: input, shape index: {}]
  %s6 = inlined_call_operand.vmem [shape: f32[8,392], index: 6, kind: output, shape index: {}]
  %s7 = sld [smem:[#allocation0]]
  $region34: #{simple_cnn_header_forward.3} parent=0
    _
  %s9 = ssub.s32 1, %s7
  %s10 = scalar_select 0, %s9, %s7
  // Predicated region
  $region2: #{simple_cnn_header_forward.3} parent=0 // pred_check
    _
  $region3: #{simple_cnn_header_forward.3} parent=0 // pred_check_branch
    %12 = sbr.rel (0) target = $region5
  $region4: #{simple_cnn_header_forward.3} parent=0 // pred_region
    _
  $region5: #{simple_cnn_header_forward.3} parent=0 // pred_fallthru
    _
  // Predicated region
  $region6: #{simple_cnn_header_forward.3} parent=0 // pred_check
    _
  $region7: #{simple_cnn_header_forward.3} parent=0 // pred_check_branch
    %14 = sbr.rel (0) target = $region9
  $region8: #{simple_cnn_header_forward.3} parent=0 // pred_region
    _
  $region9: #{simple_cnn_header_forward.3} parent=0 // pred_fallthru
    _
  // Predicated region
  $region10: #{simple_cnn_header_forward.3} parent=0 // pred_check
    _
  $region11: #{simple_cnn_header_forward.3} parent=0 // pred_check_branch
    %16 = sbr.rel (0) target = $region13
  $region12: #{simple_cnn_header_forward.3} parent=0 // pred_region
    _
  $region13: #{simple_cnn_header_forward.3} parent=0 // pred_fallthru
    _
  // Predicated region
  $region14: #{simple_cnn_header_forward.3} parent=0 // pred_check
    _
  $region15: #{simple_cnn_header_forward.3} parent=0 // pred_check_branch
    %18 = sbr.rel (0) target = $region17
  $region16: #{simple_cnn_header_forward.3} parent=0 // pred_region
    _
  $region17: #{simple_cnn_header_forward.3} parent=0 // pred_fallthru
    _
  // Predicated region
  $region18: #{simple_cnn_header_forward.3} parent=0 // pred_check
    _
  $region19: #{simple_cnn_header_forward.3} parent=0 // pred_check_branch
    %20 = sbr.rel (0) target = $region21
  $region20: #{simple_cnn_header_forward.3} parent=0 // pred_region
    _
  $region21: #{simple_cnn_header_forward.3} parent=0 // pred_fallthru
    _
  // Predicated region
  $region22: #{simple_cnn_header_forward.3} parent=0 // pred_check
    _
  $region23: #{simple_cnn_header_forward.3} parent=0 // pred_check_branch
    %22 = sbr.rel (0) target = $region25
  $region24: #{simple_cnn_header_forward.3} parent=0 // pred_region
    _
  $region25: #{simple_cnn_header_forward.3} parent=0 // pred_fallthru
    _
  %v23 = vld [vmem:[%s0] sm:$0xff]
  %v24 = vld [vmem:[%s2] sm:$0xff]
  %v25 = vld [vmem:[%s2 + $0x8] sm:$0xff]
  %v26 = vld [vmem:[%s2 + $0x10] sm:$0xff]
  %v27 = vld [vmem:[%s2 + $0x18] sm:$0xff]
  %v28 = vld [vmem:[%s2 + $0x20] sm:$0xff]
  %v29 = vld [vmem:[%s2 + $0x28] sm:$0xff]
  %v30 = vld [vmem:[%s2 + $0x30] sm:$0xff]
  %v31 = vld [vmem:[%s2 + $0x38] sm:$0xff]
  %v32 = vld [vmem:[%s2 + $0x40] sm:$0xff]
  %v33 = vld [vmem:[%s2 + $0x48] sm:$0xff]
  %v34 = vld [vmem:[%s2 + $0x50] sm:$0xff]
  %v35 = vld [vmem:[%s2 + $0x58] sm:$0xff]
  %v36 = vld [vmem:[%s2 + $0x60] sm:$0xff]
  %v37 = vld [vmem:[%s2 + $0x68] sm:$0xff]
  %v38 = vld [vmem:[%s2 + $0x70] sm:$0xff]
  %v39 = vld [vmem:[%s2 + $0x78] sm:$0xff]
  %v40 = vld [vmem:[%s2 + $0x80] sm:$0xff]
  %v41 = vld [vmem:[%s2 + $0x88] sm:$0xff]
  %v42 = vld [vmem:[%s2 + $0x90] sm:$0xff]
  %v43 = vld [vmem:[%s2 + $0x98] sm:$0xff]
  %v44 = vld [vmem:[%s2 + $0xa0] sm:$0xff]
  %v45 = vld [vmem:[%s2 + $0xa8] sm:$0xff]
  %v46 = vld [vmem:[%s2 + $0xb0] sm:$0xff]
  %v47 = vld [vmem:[%s2 + $0xb8] sm:$0xff]
  %v48 = vld [vmem:[%s2 + $0xc0] sm:$0xff]
  %v49 = vld [vmem:[%s2 + $0xc8] sm:$0xff]
  %v50 = vld [vmem:[%s2 + $0xd0] sm:$0xff]
  %v51 = vld [vmem:[%s2 + $0xd8] sm:$0xff]
  %v52 = vld [vmem:[%s2 + $0xe0] sm:$0xff]
  %v53 = vld [vmem:[%s2 + $0xe8] sm:$0xff]
  %v54 = vld [vmem:[%s2 + $0xf0] sm:$0xff]
  %v55 = vld [vmem:[%s2 + $0xf8] sm:$0xff]
  %v56 = vld [vmem:[%s2 + $0x100] sm:$0xff]
  %v57 = vld [vmem:[%s2 + $0x108] sm:$0xff]
  %v58 = vld [vmem:[%s2 + $0x110] sm:$0xff]
  %v59 = vld [vmem:[%s2 + $0x118] sm:$0xff]
  %v60 = vld [vmem:[%s2 + $0x120] sm:$0xff]
  %v61 = vld [vmem:[%s2 + $0x128] sm:$0xff]
  %v62 = vld [vmem:[%s2 + $0x130] sm:$0xff]
  %v63 = vld [vmem:[%s2 + $0x138] sm:$0xff]
  %vm64 = vcmask 654336
  %v66 = vsel %vm64, %v23, 0
  %68 = vmatpush.msra.mxu0 0.0
  %69 = vmatpush.msra.mxu0 0.0
  %70 = vmatpush.msra.mxu0 0.0
  %71 = vmatpush.msra.mxu0 0.0
  %72 = vmatpush.msra.mxu0 0.0
  %73 = vmatpush.msra.mxu0 0.0
  %74 = vmatpush.msra.mxu0 %v60
  %75 = vmatpush.msra.mxu0 %v56
  %76 = vmatpush.msra.mxu0 %v52
  %77 = vmatpush.msra.mxu0 %v48
  %78 = vmatpush.msra.mxu0 %v44
  %79 = vmatpush.msra.mxu0 %v40
  %80 = vmatpush.msra.mxu0 %v36
  %81 = vmatpush.msra.mxu0 %v32
  %82 = vmatpush.msra.mxu0 %v28
  %83 = vmatpush.msra.mxu0 %v24
  %84 = vmatmul.f32.gmra.mxu0 %v66
  %v85 = vpop.f32.mrf.mxu0
  %v86 = vadd.f32 0.0, %v85
  %87 = vdwg.mxu0
  %88 = vmatpush.msra.mxu0 0.0
  %89 = vmatpush.msra.mxu0 0.0
  %90 = vmatpush.msra.mxu0 0.0
  %91 = vmatpush.msra.mxu0 0.0
  %92 = vmatpush.msra.mxu0 0.0
  %93 = vmatpush.msra.mxu0 0.0
  %94 = vmatpush.msra.mxu0 %v61
  %95 = vmatpush.msra.mxu0 %v57
  %96 = vmatpush.msra.mxu0 %v53
  %97 = vmatpush.msra.mxu0 %v49
  %98 = vmatpush.msra.mxu0 %v45
  %99 = vmatpush.msra.mxu0 %v41
  %100 = vmatpush.msra.mxu0 %v37
  %101 = vmatpush.msra.mxu0 %v33
  %102 = vmatpush.msra.mxu0 %v29
  %103 = vmatpush.msra.mxu0 %v25
  %104 = vmatmul.f32.gmra.mxu0 %v66
  %v105 = vpop.f32.mrf.mxu0
  %v106 = vadd.f32 0.0, %v105
  %107 = vdwg.mxu0
  %108 = vmatpush.msra.mxu0 0.0
  %109 = vmatpush.msra.mxu0 0.0
  %110 = vmatpush.msra.mxu0 0.0
  %111 = vmatpush.msra.mxu0 0.0
  %112 = vmatpush.msra.mxu0 0.0
  %113 = vmatpush.msra.mxu0 0.0
  %114 = vmatpush.msra.mxu0 %v62
  %115 = vmatpush.msra.mxu0 %v58
  %116 = vmatpush.msra.mxu0 %v54
  %117 = vmatpush.msra.mxu0 %v50
  %118 = vmatpush.msra.mxu0 %v46
  %119 = vmatpush.msra.mxu0 %v42
  %120 = vmatpush.msra.mxu0 %v38
  %121 = vmatpush.msra.mxu0 %v34
  %122 = vmatpush.msra.mxu0 %v30
  %123 = vmatpush.msra.mxu0 %v26
  %124 = vmatmul.f32.gmra.mxu0 %v66
  %v125 = vpop.f32.mrf.mxu0
  %v126 = vadd.f32 0.0, %v125
  %127 = vdwg.mxu0
  %128 = vmatpush.msra.mxu0 0.0
  %129 = vmatpush.msra.mxu0 0.0
  %130 = vmatpush.msra.mxu0 0.0
  %131 = vmatpush.msra.mxu0 0.0
  %132 = vmatpush.msra.mxu0 0.0
  %133 = vmatpush.msra.mxu0 0.0
  %134 = vmatpush.msra.mxu0 %v63
  %135 = vmatpush.msra.mxu0 %v59
  %136 = vmatpush.msra.mxu0 %v55
  %137 = vmatpush.msra.mxu0 %v51
  %138 = vmatpush.msra.mxu0 %v47
  %139 = vmatpush.msra.mxu0 %v43
  %140 = vmatpush.msra.mxu0 %v39
  %141 = vmatpush.msra.mxu0 %v35
  %142 = vmatpush.msra.mxu0 %v31
  %143 = vmatpush.msra.mxu0 %v27
  %144 = vmatmul.f32.gmra.mxu0 %v66
  %v145 = vpop.f32.mrf.mxu0
  %v146 = vadd.f32 0.0, %v145
  %147 = vdwg.mxu0
  %v148 = vld [vmem:[%s3] sm:$0xff]
  %v149 = vld [vmem:[%s3 + $0x8] sm:$0xff]
  %v150 = vld [vmem:[%s3 + $0x10] sm:$0xff]
  %v151 = vld [vmem:[%s3 + $0x18] sm:$0xff]
  %v152 = vld [vmem:[%s3 + $0x20] sm:$0xff]
  %v153 = vld [vmem:[%s3 + $0x28] sm:$0xff]
  %v154 = vld [vmem:[%s3 + $0x30] sm:$0xff]
  %v155 = vld [vmem:[%s3 + $0x38] sm:$0xff]
  %v156 = vld [vmem:[%s3 + $0x40] sm:$0xff]
  %v157 = vld [vmem:[%s3 + $0x48] sm:$0xff]
  %v158 = vld [vmem:[%s3 + $0x50] sm:$0xff]
  %v159 = vld [vmem:[%s3 + $0x58] sm:$0xff]
  %v160 = vld [vmem:[%s3 + $0x60] sm:$0xff]
  %v161 = vld [vmem:[%s3 + $0x68] sm:$0xff]
  %v162 = vld [vmem:[%s3 + $0x70] sm:$0xff]
  %v163 = vld [vmem:[%s3 + $0x78] sm:$0xff]
  %v164 = vld [vmem:[%s3 + $0x80] sm:$0xff]
  %v165 = vld [vmem:[%s3 + $0x88] sm:$0xff]
  %v166 = vld [vmem:[%s3 + $0x90] sm:$0xff]
  %v167 = vld [vmem:[%s3 + $0x98] sm:$0xff]
  %v168 = vld [vmem:[%s3 + $0xa0] sm:$0xff]
  %v169 = vld [vmem:[%s3 + $0xa8] sm:$0xff]
  %v170 = vld [vmem:[%s3 + $0xb0] sm:$0xff]
  %v171 = vld [vmem:[%s3 + $0xb8] sm:$0xff]
  %v172 = vld [vmem:[%s3 + $0xc0] sm:$0xff]
  %v173 = vld [vmem:[%s3 + $0xc8] sm:$0xff]
  %v174 = vld [vmem:[%s3 + $0xd0] sm:$0xff]
  %v175 = vld [vmem:[%s3 + $0xd8] sm:$0xff]
  %v176 = vld [vmem:[%s3 + $0xe0] sm:$0xff]
  %v177 = vld [vmem:[%s3 + $0xe8] sm:$0xff]
  %v178 = vld [vmem:[%s3 + $0xf0] sm:$0xff]
  %v179 = vld [vmem:[%s3 + $0xf8] sm:$0xff]
  %v180 = vld [vmem:[%s3 + $0x100] sm:$0xff]
  %v181 = vld [vmem:[%s3 + $0x108] sm:$0xff]
  %v182 = vld [vmem:[%s3 + $0x110] sm:$0xff]
  %v183 = vld [vmem:[%s3 + $0x118] sm:$0xff]
  %v184 = vld [vmem:[%s3 + $0x120] sm:$0xff]
  %v185 = vld [vmem:[%s3 + $0x128] sm:$0xff]
  %v186 = vld [vmem:[%s3 + $0x130] sm:$0xff]
  %v187 = vld [vmem:[%s3 + $0x138] sm:$0xff]
  %188 = vmatpush.msra.mxu0 0.0
  %189 = vmatpush.msra.mxu0 0.0
  %190 = vmatpush.msra.mxu0 0.0
  %191 = vmatpush.msra.mxu0 0.0
  %192 = vmatpush.msra.mxu0 0.0
  %193 = vmatpush.msra.mxu0 0.0
  %194 = vmatpush.msra.mxu0 %v184
  %195 = vmatpush.msra.mxu0 %v180
  %196 = vmatpush.msra.mxu0 %v176
  %197 = vmatpush.msra.mxu0 %v172
  %198 = vmatpush.msra.mxu0 %v168
  %199 = vmatpush.msra.mxu0 %v164
  %200 = vmatpush.msra.mxu0 %v160
  %201 = vmatpush.msra.mxu0 %v156
  %202 = vmatpush.msra.mxu0 %v152
  %203 = vmatpush.msra.mxu0 %v148
  %204 = vmatmul.f32.gmra.mxu0 %v66
  %v205 = vpop.f32.mrf.mxu0
  %v206 = vadd.f32 0.0, %v205
  %207 = vdwg.mxu0
  %208 = vmatpush.msra.mxu0 0.0
  %209 = vmatpush.msra.mxu0 0.0
  %210 = vmatpush.msra.mxu0 0.0
  %211 = vmatpush.msra.mxu0 0.0
  %212 = vmatpush.msra.mxu0 0.0
  %213 = vmatpush.msra.mxu0 0.0
  %214 = vmatpush.msra.mxu0 %v185
  %215 = vmatpush.msra.mxu0 %v181
  %216 = vmatpush.msra.mxu0 %v177
  %217 = vmatpush.msra.mxu0 %v173
  %218 = vmatpush.msra.mxu0 %v169
  %219 = vmatpush.msra.mxu0 %v165
  %220 = vmatpush.msra.mxu0 %v161
  %221 = vmatpush.msra.mxu0 %v157
  %222 = vmatpush.msra.mxu0 %v153
  %223 = vmatpush.msra.mxu0 %v149
  %224 = vmatmul.f32.gmra.mxu0 %v66
  %v225 = vpop.f32.mrf.mxu0
  %v226 = vadd.f32 0.0, %v225
  %227 = vdwg.mxu0
  %228 = vmatpush.msra.mxu0 0.0
  %229 = vmatpush.msra.mxu0 0.0
  %230 = vmatpush.msra.mxu0 0.0
  %231 = vmatpush.msra.mxu0 0.0
  %232 = vmatpush.msra.mxu0 0.0
  %233 = vmatpush.msra.mxu0 0.0
  %234 = vmatpush.msra.mxu0 %v186
  %235 = vmatpush.msra.mxu0 %v182
  %236 = vmatpush.msra.mxu0 %v178
  %237 = vmatpush.msra.mxu0 %v174
  %238 = vmatpush.msra.mxu0 %v170
  %239 = vmatpush.msra.mxu0 %v166
  %240 = vmatpush.msra.mxu0 %v162
  %241 = vmatpush.msra.mxu0 %v158
  %242 = vmatpush.msra.mxu0 %v154
  %243 = vmatpush.msra.mxu0 %v150
  %244 = vmatmul.f32.gmra.mxu0 %v66
  %v245 = vpop.f32.mrf.mxu0
  %v246 = vadd.f32 0.0, %v245
  %247 = vdwg.mxu0
  %248 = vmatpush.msra.mxu0 0.0
  %249 = vmatpush.msra.mxu0 0.0
  %250 = vmatpush.msra.mxu0 0.0
  %251 = vmatpush.msra.mxu0 0.0
  %252 = vmatpush.msra.mxu0 0.0
  %253 = vmatpush.msra.mxu0 0.0
  %254 = vmatpush.msra.mxu0 %v187
  %255 = vmatpush.msra.mxu0 %v183
  %256 = vmatpush.msra.mxu0 %v179
  %257 = vmatpush.msra.mxu0 %v175
  %258 = vmatpush.msra.mxu0 %v171
  %259 = vmatpush.msra.mxu0 %v167
  %260 = vmatpush.msra.mxu0 %v163
  %261 = vmatpush.msra.mxu0 %v159
  %262 = vmatpush.msra.mxu0 %v155
  %263 = vmatpush.msra.mxu0 %v151
  %264 = vmatmul.f32.gmra.mxu0 %v66
  %v265 = vpop.f32.mrf.mxu0
  %v266 = vadd.f32 0.0, %v265
  %267 = vdwg.mxu0
  %v268 = vld [vmem:[%s4] sm:$0xff]
  %v269 = vld [vmem:[%s4 + $0x8] sm:$0xff]
  %v270 = vld [vmem:[%s4 + $0x10] sm:$0xff]
  %v271 = vld [vmem:[%s4 + $0x18] sm:$0xff]
  %v272 = vld [vmem:[%s4 + $0x20] sm:$0xff]
  %v273 = vld [vmem:[%s4 + $0x28] sm:$0xff]
  %v274 = vld [vmem:[%s4 + $0x30] sm:$0xff]
  %v275 = vld [vmem:[%s4 + $0x38] sm:$0xff]
  %v276 = vld [vmem:[%s4 + $0x40] sm:$0xff]
  %v277 = vld [vmem:[%s4 + $0x48] sm:$0xff]
  %v278 = vld [vmem:[%s4 + $0x50] sm:$0xff]
  %v279 = vld [vmem:[%s4 + $0x58] sm:$0xff]
  %v280 = vld [vmem:[%s4 + $0x60] sm:$0xff]
  %v281 = vld [vmem:[%s4 + $0x68] sm:$0xff]
  %v282 = vld [vmem:[%s4 + $0x70] sm:$0xff]
  %v283 = vld [vmem:[%s4 + $0x78] sm:$0xff]
  %v284 = vld [vmem:[%s4 + $0x80] sm:$0xff]
  %v285 = vld [vmem:[%s4 + $0x88] sm:$0xff]
  %v286 = vld [vmem:[%s4 + $0x90] sm:$0xff]
  %v287 = vld [vmem:[%s4 + $0x98] sm:$0xff]
  %v288 = vld [vmem:[%s4 + $0xa0] sm:$0xff]
  %v289 = vld [vmem:[%s4 + $0xa8] sm:$0xff]
  %v290 = vld [vmem:[%s4 + $0xb0] sm:$0xff]
  %v291 = vld [vmem:[%s4 + $0xb8] sm:$0xff]
  %v292 = vld [vmem:[%s4 + $0xc0] sm:$0xff]
  %v293 = vld [vmem:[%s4 + $0xc8] sm:$0xff]
  %v294 = vld [vmem:[%s4 + $0xd0] sm:$0xff]
  %v295 = vld [vmem:[%s4 + $0xd8] sm:$0xff]
  %v296 = vld [vmem:[%s4 + $0xe0] sm:$0xff]
  %v297 = vld [vmem:[%s4 + $0xe8] sm:$0xff]
  %v298 = vld [vmem:[%s4 + $0xf0] sm:$0xff]
  %v299 = vld [vmem:[%s4 + $0xf8] sm:$0xff]
  %v300 = vld [vmem:[%s4 + $0x100] sm:$0xff]
  %v301 = vld [vmem:[%s4 + $0x108] sm:$0xff]
  %v302 = vld [vmem:[%s4 + $0x110] sm:$0xff]
  %v303 = vld [vmem:[%s4 + $0x118] sm:$0xff]
  %v304 = vld [vmem:[%s4 + $0x120] sm:$0xff]
  %v305 = vld [vmem:[%s4 + $0x128] sm:$0xff]
  %v306 = vld [vmem:[%s4 + $0x130] sm:$0xff]
  %v307 = vld [vmem:[%s4 + $0x138] sm:$0xff]
  %308 = vmatpush.msra.mxu0 0.0
  %309 = vmatpush.msra.mxu0 0.0
  %310 = vmatpush.msra.mxu0 0.0
  %311 = vmatpush.msra.mxu0 0.0
  %312 = vmatpush.msra.mxu0 0.0
  %313 = vmatpush.msra.mxu0 0.0
  %314 = vmatpush.msra.mxu0 %v304
  %315 = vmatpush.msra.mxu0 %v300
  %316 = vmatpush.msra.mxu0 %v296
  %317 = vmatpush.msra.mxu0 %v292
  %318 = vmatpush.msra.mxu0 %v288
  %319 = vmatpush.msra.mxu0 %v284
  %320 = vmatpush.msra.mxu0 %v280
  %321 = vmatpush.msra.mxu0 %v276
  %322 = vmatpush.msra.mxu0 %v272
  %323 = vmatpush.msra.mxu0 %v268
  %324 = vmatmul.f32.gmra.mxu0 %v66
  %v325 = vpop.f32.mrf.mxu0
  %v326 = vadd.f32 0.0, %v325
  %327 = vdwg.mxu0
  %328 = vmatpush.msra.mxu0 0.0
  %329 = vmatpush.msra.mxu0 0.0
  %330 = vmatpush.msra.mxu0 0.0
  %331 = vmatpush.msra.mxu0 0.0
  %332 = vmatpush.msra.mxu0 0.0
  %333 = vmatpush.msra.mxu0 0.0
  %334 = vmatpush.msra.mxu0 %v305
  %335 = vmatpush.msra.mxu0 %v301
  %336 = vmatpush.msra.mxu0 %v297
  %337 = vmatpush.msra.mxu0 %v293
  %338 = vmatpush.msra.mxu0 %v289
  %339 = vmatpush.msra.mxu0 %v285
  %340 = vmatpush.msra.mxu0 %v281
  %341 = vmatpush.msra.mxu0 %v277
  %342 = vmatpush.msra.mxu0 %v273
  %343 = vmatpush.msra.mxu0 %v269
  %344 = vmatmul.f32.gmra.mxu0 %v66
  %v345 = vpop.f32.mrf.mxu0
  %v346 = vadd.f32 0.0, %v345
  %347 = vdwg.mxu0
  %348 = vmatpush.msra.mxu0 0.0
  %349 = vmatpush.msra.mxu0 0.0
  %350 = vmatpush.msra.mxu0 0.0
  %351 = vmatpush.msra.mxu0 0.0
  %352 = vmatpush.msra.mxu0 0.0
  %353 = vmatpush.msra.mxu0 0.0
  %354 = vmatpush.msra.mxu0 %v306
  %355 = vmatpush.msra.mxu0 %v302
  %356 = vmatpush.msra.mxu0 %v298
  %357 = vmatpush.msra.mxu0 %v294
  %358 = vmatpush.msra.mxu0 %v290
  %359 = vmatpush.msra.mxu0 %v286
  %360 = vmatpush.msra.mxu0 %v282
  %361 = vmatpush.msra.mxu0 %v278
  %362 = vmatpush.msra.mxu0 %v274
  %363 = vmatpush.msra.mxu0 %v270
  %364 = vmatmul.f32.gmra.mxu0 %v66
  %v365 = vpop.f32.mrf.mxu0
  %v366 = vadd.f32 0.0, %v365
  %367 = vdwg.mxu0
  %368 = vmatpush.msra.mxu0 0.0
  %369 = vmatpush.msra.mxu0 0.0
  %370 = vmatpush.msra.mxu0 0.0
  %371 = vmatpush.msra.mxu0 0.0
  %372 = vmatpush.msra.mxu0 0.0
  %373 = vmatpush.msra.mxu0 0.0
  %374 = vmatpush.msra.mxu0 %v307
  %375 = vmatpush.msra.mxu0 %v303
  %376 = vmatpush.msra.mxu0 %v299
  %377 = vmatpush.msra.mxu0 %v295
  %378 = vmatpush.msra.mxu0 %v291
  %379 = vmatpush.msra.mxu0 %v287
  %380 = vmatpush.msra.mxu0 %v283
  %381 = vmatpush.msra.mxu0 %v279
  %382 = vmatpush.msra.mxu0 %v275
  %383 = vmatpush.msra.mxu0 %v271
  %384 = vmatmul.f32.gmra.mxu0 %v66
  %v385 = vpop.f32.mrf.mxu0
  %v386 = vadd.f32 0.0, %v385
  %387 = vdwg.mxu0
  %v388 = vld [vmem:[%s5] sm:$0xff]
  %v389 = vld [vmem:[%s5 + $0x8] sm:$0xff]
  %v390 = vld [vmem:[%s5 + $0x10] sm:$0xff]
  %v391 = vld [vmem:[%s5 + $0x18] sm:$0xff]
  %v392 = vld [vmem:[%s5 + $0x20] sm:$0xff]
  %v393 = vld [vmem:[%s5 + $0x28] sm:$0xff]
  %v394 = vld [vmem:[%s5 + $0x30] sm:$0xff]
  %v395 = vld [vmem:[%s5 + $0x38] sm:$0xff]
  %v396 = vld [vmem:[%s5 + $0x40] sm:$0xff]
  %v397 = vld [vmem:[%s5 + $0x48] sm:$0xff]
  %v398 = vld [vmem:[%s5 + $0x50] sm:$0xff]
  %v399 = vld [vmem:[%s5 + $0x58] sm:$0xff]
  %v400 = vld [vmem:[%s5 + $0x60] sm:$0xff]
  %v401 = vld [vmem:[%s5 + $0x68] sm:$0xff]
  %v402 = vld [vmem:[%s5 + $0x70] sm:$0xff]
  %v403 = vld [vmem:[%s5 + $0x78] sm:$0xff]
  %v404 = vld [vmem:[%s5 + $0x80] sm:$0xff]
  %v405 = vld [vmem:[%s5 + $0x88] sm:$0xff]
  %v406 = vld [vmem:[%s5 + $0x90] sm:$0xff]
  %v407 = vld [vmem:[%s5 + $0x98] sm:$0xff]
  %v408 = vld [vmem:[%s5 + $0xa0] sm:$0xff]
  %v409 = vld [vmem:[%s5 + $0xa8] sm:$0xff]
  %v410 = vld [vmem:[%s5 + $0xb0] sm:$0xff]
  %v411 = vld [vmem:[%s5 + $0xb8] sm:$0xff]
  %v412 = vld [vmem:[%s5 + $0xc0] sm:$0xff]
  %v413 = vld [vmem:[%s5 + $0xc8] sm:$0xff]
  %v414 = vld [vmem:[%s5 + $0xd0] sm:$0xff]
  %v415 = vld [vmem:[%s5 + $0xd8] sm:$0xff]
  %v416 = vld [vmem:[%s5 + $0xe0] sm:$0xff]
  %v417 = vld [vmem:[%s5 + $0xe8] sm:$0xff]
  %v418 = vld [vmem:[%s5 + $0xf0] sm:$0xff]
  %v419 = vld [vmem:[%s5 + $0xf8] sm:$0xff]
  %v420 = vld [vmem:[%s5 + $0x100] sm:$0xff]
  %v421 = vld [vmem:[%s5 + $0x108] sm:$0xff]
  %v422 = vld [vmem:[%s5 + $0x110] sm:$0xff]
  %v423 = vld [vmem:[%s5 + $0x118] sm:$0xff]
  %v424 = vld [vmem:[%s5 + $0x120] sm:$0xff]
  %v425 = vld [vmem:[%s5 + $0x128] sm:$0xff]
  %v426 = vld [vmem:[%s5 + $0x130] sm:$0xff]
  %v427 = vld [vmem:[%s5 + $0x138] sm:$0xff]
  %428 = vmatpush.msra.mxu0 0.0
  %429 = vmatpush.msra.mxu0 0.0
  %430 = vmatpush.msra.mxu0 0.0
  %431 = vmatpush.msra.mxu0 0.0
  %432 = vmatpush.msra.mxu0 0.0
  %433 = vmatpush.msra.mxu0 0.0
  %434 = vmatpush.msra.mxu0 %v424
  %435 = vmatpush.msra.mxu0 %v420
  %436 = vmatpush.msra.mxu0 %v416
  %437 = vmatpush.msra.mxu0 %v412
  %438 = vmatpush.msra.mxu0 %v408
  %439 = vmatpush.msra.mxu0 %v404
  %440 = vmatpush.msra.mxu0 %v400
  %441 = vmatpush.msra.mxu0 %v396
  %442 = vmatpush.msra.mxu0 %v392
  %443 = vmatpush.msra.mxu0 %v388
  %444 = vmatmul.f32.gmra.mxu0 %v66
  %v445 = vpop.f32.mrf.mxu0
  %v446 = vadd.f32 0.0, %v445
  %447 = vdwg.mxu0
  %448 = vmatpush.msra.mxu0 0.0
  %449 = vmatpush.msra.mxu0 0.0
  %450 = vmatpush.msra.mxu0 0.0
  %451 = vmatpush.msra.mxu0 0.0
  %452 = vmatpush.msra.mxu0 0.0
  %453 = vmatpush.msra.mxu0 0.0
  %454 = vmatpush.msra.mxu0 %v425
  %455 = vmatpush.msra.mxu0 %v421
  %456 = vmatpush.msra.mxu0 %v417
  %457 = vmatpush.msra.mxu0 %v413
  %458 = vmatpush.msra.mxu0 %v409
  %459 = vmatpush.msra.mxu0 %v405
  %460 = vmatpush.msra.mxu0 %v401
  %461 = vmatpush.msra.mxu0 %v397
  %462 = vmatpush.msra.mxu0 %v393
  %463 = vmatpush.msra.mxu0 %v389
  %464 = vmatmul.f32.gmra.mxu0 %v66
  %v465 = vpop.f32.mrf.mxu0
  %v466 = vadd.f32 0.0, %v465
  %467 = vdwg.mxu0
  %468 = vmatpush.msra.mxu0 0.0
  %469 = vmatpush.msra.mxu0 0.0
  %470 = vmatpush.msra.mxu0 0.0
  %471 = vmatpush.msra.mxu0 0.0
  %472 = vmatpush.msra.mxu0 0.0
  %473 = vmatpush.msra.mxu0 0.0
  %474 = vmatpush.msra.mxu0 %v426
  %475 = vmatpush.msra.mxu0 %v422
  %476 = vmatpush.msra.mxu0 %v418
  %477 = vmatpush.msra.mxu0 %v414
  %478 = vmatpush.msra.mxu0 %v410
  %479 = vmatpush.msra.mxu0 %v406
  %480 = vmatpush.msra.mxu0 %v402
  %481 = vmatpush.msra.mxu0 %v398
  %482 = vmatpush.msra.mxu0 %v394
  %483 = vmatpush.msra.mxu0 %v390
  %484 = vmatmul.f32.gmra.mxu0 %v66
  %v485 = vpop.f32.mrf.mxu0
  %v486 = vadd.f32 0.0, %v485
  %487 = vdwg.mxu0
  %488 = vmatpush.msra.mxu0 0.0
  %489 = vmatpush.msra.mxu0 0.0
  %490 = vmatpush.msra.mxu0 0.0
  %491 = vmatpush.msra.mxu0 0.0
  %492 = vmatpush.msra.mxu0 0.0
  %493 = vmatpush.msra.mxu0 0.0
  %494 = vmatpush.msra.mxu0 %v427
  %495 = vmatpush.msra.mxu0 %v423
  %496 = vmatpush.msra.mxu0 %v419
  %497 = vmatpush.msra.mxu0 %v415
  %498 = vmatpush.msra.mxu0 %v411
  %499 = vmatpush.msra.mxu0 %v407
  %500 = vmatpush.msra.mxu0 %v403
  %501 = vmatpush.msra.mxu0 %v399
  %502 = vmatpush.msra.mxu0 %v395
  %503 = vmatpush.msra.mxu0 %v391
  %504 = vmatmul.f32.gmra.mxu0 %v66
  %v505 = vpop.f32.mrf.mxu0
  %v506 = vadd.f32 0.0, %v505
  %507 = vdwg.mxu0
  %v508 = vmax.f32 %v86, %v206
  %v509 = vmax.f32 %v106, %v226
  %v510 = vmax.f32 %v126, %v246
  %v511 = vmax.f32 %v146, %v266
  %v512 = vmax.f32 %v326, %v446
  %v513 = vmax.f32 %v346, %v466
  %v514 = vmax.f32 %v366, %v486
  %v515 = vmax.f32 %v386, %v506
  %v516 = vmax.f32 %v508, %v512
  %v517 = vmax.f32 %v509, %v513
  %v518 = vmax.f32 %v510, %v514
  %v519 = vmax.f32 %v511, %v515
  %v520 = vld [vmem:[%s1] sm:$0xff]
  %522 = vset.pattern.permute.xlu0 0
  %523 = vperm.xlu0 %522, %v520
  %v524 = vpop.permute.xlu0 %523
  %v526 = vadd.f32 %v516, %v524
  %v527 = vadd.f32 %v517, %v524
  %v528 = vadd.f32 %v518, %v524
  %v529 = vadd.f32 %v519, %v524
  %v530 = vmax.f32 %v526, 0.0
  %v531 = vmax.f32 %v527, 0.0
  %v532 = vmax.f32 %v528, 0.0
  %v533 = vmax.f32 %v529, 0.0
  %534 = vst [vmem:[%s6] sm:$0xff] %v530
  %535 = vst [vmem:[%s6 + $0x8] sm:$0xff] %v531
  %536 = vst [vmem:[%s6 + $0x10] sm:$0xff] %v532
  %vm537 = vcmask 64512
  %538 = vst.msk [vmem:[%s6 + $0x18] sm:$0xff] %vm537, %v533
  // Predicated region
  $region26: #{simple_cnn_header_forward.3} parent=0 // pred_check
    _
  $region27: #{simple_cnn_header_forward.3} parent=0 // pred_check_branch
    %540 = sbr.rel (0) target = $region29
  $region28: #{simple_cnn_header_forward.3} parent=0 // pred_region
    _
  $region29: #{simple_cnn_header_forward.3} parent=0 // pred_fallthru
    _
  // Predicated region
  $region30: #{simple_cnn_header_forward.3} parent=0 // pred_check
    _
  $region31: #{simple_cnn_header_forward.3} parent=0 // pred_check_branch
    %542 = sbr.rel (0) target = $region33
  $region32: #{simple_cnn_header_forward.3} parent=0 // pred_region
    _
  $region33: #{simple_cnn_header_forward.3} parent=0 // pred_fallthru
    _

// kernel: simple_cnn_header_forward.4
$region0: #{simple_cnn_header_forward.4}
  #allocation0 [shape = 'u32[]', space=smem, size = 0x4, offset = 0x4, fixed_abs, tag = 'smem constant byte address 0x4 - core index']
  #allocation1 [shape = 'u32[72,128]{1,0:T(1,128)}', space=vmem, size = 0x9000, scoped, tag = 'internal scratch']
  %s0 = inlined_call_operand.vmem [shape: f32[16,152], index: 0, kind: input, shape index: {}]
  %s1 = inlined_call_operand.vmem [shape: f32[16,1], index: 1, kind: input, shape index: {}]
  %s2 = inlined_call_operand.vmem [shape: f32[152,50], index: 2, kind: input, shape index: {}]
  %s3 = inlined_call_operand.vmem [shape: f32[152,50], index: 3, kind: input, shape index: {}]
  %s4 = inlined_call_operand.vmem [shape: f32[152,50], index: 4, kind: input, shape index: {}]
  %s5 = inlined_call_operand.vmem [shape: f32[152,50], index: 5, kind: input, shape index: {}]
  %s6 = inlined_call_operand.vmem [shape: f32[16,50], index: 6, kind: output, shape index: {}]
  %s7 = sld [smem:[#allocation0]]
  $region34: #{simple_cnn_header_forward.4} parent=0
    _
  %s9 = ssub.s32 1, %s7
  %s10 = scalar_select 0, %s9, %s7
  // Predicated region
  $region2: #{simple_cnn_header_forward.4} parent=0 // pred_check
    _
  $region3: #{simple_cnn_header_forward.4} parent=0 // pred_check_branch
    %12 = sbr.rel (0) target = $region5
  $region4: #{simple_cnn_header_forward.4} parent=0 // pred_region
    _
  $region5: #{simple_cnn_header_forward.4} parent=0 // pred_fallthru
    _
  // Predicated region
  $region6: #{simple_cnn_header_forward.4} parent=0 // pred_check
    _
  $region7: #{simple_cnn_header_forward.4} parent=0 // pred_check_branch
    %14 = sbr.rel (0) target = $region9
  $region8: #{simple_cnn_header_forward.4} parent=0 // pred_region
    _
  $region9: #{simple_cnn_header_forward.4} parent=0 // pred_fallthru
    _
  // Predicated region
  $region10: #{simple_cnn_header_forward.4} parent=0 // pred_check
    _
  $region11: #{simple_cnn_header_forward.4} parent=0 // pred_check_branch
    %16 = sbr.rel (0) target = $region13
  $region12: #{simple_cnn_header_forward.4} parent=0 // pred_region
    _
  $region13: #{simple_cnn_header_forward.4} parent=0 // pred_fallthru
    _
  // Predicated region
  $region14: #{simple_cnn_header_forward.4} parent=0 // pred_check
    _
  $region15: #{simple_cnn_header_forward.4} parent=0 // pred_check_branch
    %18 = sbr.rel (0) target = $region17
  $region16: #{simple_cnn_header_forward.4} parent=0 // pred_region
    _
  $region17: #{simple_cnn_header_forward.4} parent=0 // pred_fallthru
    _
  // Predicated region
  $region18: #{simple_cnn_header_forward.4} parent=0 // pred_check
    _
  $region19: #{simple_cnn_header_forward.4} parent=0 // pred_check_branch
    %20 = sbr.rel (0) target = $region21
  $region20: #{simple_cnn_header_forward.4} parent=0 // pred_region
    _
  $region21: #{simple_cnn_header_forward.4} parent=0 // pred_fallthru
    _
  // Predicated region
  $region22: #{simple_cnn_header_forward.4} parent=0 // pred_check
    _
  $region23: #{simple_cnn_header_forward.4} parent=0 // pred_check_branch
    %22 = sbr.rel (0) target = $region25
  $region24: #{simple_cnn_header_forward.4} parent=0 // pred_region
    _
  $region25: #{simple_cnn_header_forward.4} parent=0 // pred_fallthru
    _
  %v23 = vld [vmem:[%s0] sm:$0xff]
  %v24 = vld [vmem:[%s0 + $0x8] sm:$0xff]
  %v25 = vld [vmem:[%s0 + $0x10] sm:$0xff]
  %v26 = vld [vmem:[%s0 + $0x18] sm:$0xff]
  %v27 = vld [vmem:[%s2] sm:$0xff]
  %v28 = vld [vmem:[%s2 + $0x8] sm:$0xff]
  %v29 = vld [vmem:[%s2 + $0x10] sm:$0xff]
  %v30 = vld [vmem:[%s2 + $0x18] sm:$0xff]
  %v31 = vld [vmem:[%s2 + $0x20] sm:$0xff]
  %v32 = vld [vmem:[%s2 + $0x28] sm:$0xff]
  %v33 = vld [vmem:[%s2 + $0x30] sm:$0xff]
  %v34 = vld [vmem:[%s2 + $0x38] sm:$0xff]
  %v35 = vld [vmem:[%s2 + $0x40] sm:$0xff]
  %v36 = vld [vmem:[%s2 + $0x48] sm:$0xff]
  %v37 = vld [vmem:[%s2 + $0x50] sm:$0xff]
  %v38 = vld [vmem:[%s2 + $0x58] sm:$0xff]
  %v39 = vld [vmem:[%s2 + $0x60] sm:$0xff]
  %v40 = vld [vmem:[%s2 + $0x68] sm:$0xff]
  %v41 = vld [vmem:[%s2 + $0x70] sm:$0xff]
  %v42 = vld [vmem:[%s2 + $0x78] sm:$0xff]
  %v43 = vld [vmem:[%s2 + $0x80] sm:$0xff]
  %v44 = vld [vmem:[%s2 + $0x88] sm:$0xff]
  %v45 = vld [vmem:[%s2 + $0x90] sm:$0xff]
  %vm46 = vcmask 195584
  %v48 = vsel %vm46, %v24, 0
  %v51 = vsel %vm46, %v26, 0
  %53 = vmatpush.msra.mxu0 %v42
  %54 = vmatpush.msra.mxu0 %v41
  %55 = vmatpush.msra.mxu0 %v40
  %56 = vmatpush.msra.mxu0 %v39
  %57 = vmatpush.msra.mxu0 %v38
  %58 = vmatpush.msra.mxu0 %v37
  %59 = vmatpush.msra.mxu0 %v36
  %60 = vmatpush.msra.mxu0 %v35
  %61 = vmatpush.msra.mxu0 %v34
  %62 = vmatpush.msra.mxu0 %v33
  %63 = vmatpush.msra.mxu0 %v32
  %64 = vmatpush.msra.mxu0 %v31
  %65 = vmatpush.msra.mxu0 %v30
  %66 = vmatpush.msra.mxu0 %v29
  %67 = vmatpush.msra.mxu0 %v28
  %68 = vmatpush.msra.mxu0 %v27
  %69 = vmatmul.f32.gmra.mxu0 %v23
  %v70 = vpop.f32.mrf.mxu0
  %v71 = vadd.f32 0.0, %v70
  %72 = vmatmul.f32.gmra.mxu0 %v25
  %v73 = vpop.f32.mrf.mxu0
  %v74 = vadd.f32 0.0, %v73
  %75 = vdwg.mxu0
  %76 = vmatpush.msra.mxu0 0.0
  %77 = vmatpush.msra.mxu0 0.0
  %78 = vmatpush.msra.mxu0 0.0
  %79 = vmatpush.msra.mxu0 0.0
  %80 = vmatpush.msra.mxu0 0.0
  %81 = vmatpush.msra.mxu0 0.0
  %82 = vmatpush.msra.mxu0 0.0
  %83 = vmatpush.msra.mxu0 0.0
  %84 = vmatpush.msra.mxu0 0.0
  %85 = vmatpush.msra.mxu0 0.0
  %86 = vmatpush.msra.mxu0 0.0
  %87 = vmatpush.msra.mxu0 0.0
  %88 = vmatpush.msra.mxu0 0.0
  %89 = vmatpush.msra.mxu0 %v45
  %90 = vmatpush.msra.mxu0 %v44
  %91 = vmatpush.msra.mxu0 %v43
  %92 = vmatmul.f32.gmra.mxu0 %v48
  %v93 = vpop.f32.mrf.mxu0
  %v94 = vadd.f32 %v71, %v93
  %95 = vmatmul.f32.gmra.mxu0 %v51
  %v96 = vpop.f32.mrf.mxu0
  %v97 = vadd.f32 %v74, %v96
  %98 = vdwg.mxu0
  %v99 = vld [vmem:[%s3] sm:$0xff]
  %v100 = vld [vmem:[%s3 + $0x8] sm:$0xff]
  %v101 = vld [vmem:[%s3 + $0x10] sm:$0xff]
  %v102 = vld [vmem:[%s3 + $0x18] sm:$0xff]
  %v103 = vld [vmem:[%s3 + $0x20] sm:$0xff]
  %v104 = vld [vmem:[%s3 + $0x28] sm:$0xff]
  %v105 = vld [vmem:[%s3 + $0x30] sm:$0xff]
  %v106 = vld [vmem:[%s3 + $0x38] sm:$0xff]
  %v107 = vld [vmem:[%s3 + $0x40] sm:$0xff]
  %v108 = vld [vmem:[%s3 + $0x48] sm:$0xff]
  %v109 = vld [vmem:[%s3 + $0x50] sm:$0xff]
  %v110 = vld [vmem:[%s3 + $0x58] sm:$0xff]
  %v111 = vld [vmem:[%s3 + $0x60] sm:$0xff]
  %v112 = vld [vmem:[%s3 + $0x68] sm:$0xff]
  %v113 = vld [vmem:[%s3 + $0x70] sm:$0xff]
  %v114 = vld [vmem:[%s3 + $0x78] sm:$0xff]
  %v115 = vld [vmem:[%s3 + $0x80] sm:$0xff]
  %v116 = vld [vmem:[%s3 + $0x88] sm:$0xff]
  %v117 = vld [vmem:[%s3 + $0x90] sm:$0xff]
  %118 = vmatpush.msra.mxu0 %v114
  %119 = vmatpush.msra.mxu0 %v113
  %120 = vmatpush.msra.mxu0 %v112
  %121 = vmatpush.msra.mxu0 %v111
  %122 = vmatpush.msra.mxu0 %v110
  %123 = vmatpush.msra.mxu0 %v109
  %124 = vmatpush.msra.mxu0 %v108
  %125 = vmatpush.msra.mxu0 %v107
  %126 = vmatpush.msra.mxu0 %v106
  %127 = vmatpush.msra.mxu0 %v105
  %128 = vmatpush.msra.mxu0 %v104
  %129 = vmatpush.msra.mxu0 %v103
  %130 = vmatpush.msra.mxu0 %v102
  %131 = vmatpush.msra.mxu0 %v101
  %132 = vmatpush.msra.mxu0 %v100
  %133 = vmatpush.msra.mxu0 %v99
  %134 = vmatmul.f32.gmra.mxu0 %v23
  %v135 = vpop.f32.mrf.mxu0
  %v136 = vadd.f32 0.0, %v135
  %137 = vmatmul.f32.gmra.mxu0 %v25
  %v138 = vpop.f32.mrf.mxu0
  %v139 = vadd.f32 0.0, %v138
  %140 = vdwg.mxu0
  %141 = vmatpush.msra.mxu0 0.0
  %142 = vmatpush.msra.mxu0 0.0
  %143 = vmatpush.msra.mxu0 0.0
  %144 = vmatpush.msra.mxu0 0.0
  %145 = vmatpush.msra.mxu0 0.0
  %146 = vmatpush.msra.mxu0 0.0
  %147 = vmatpush.msra.mxu0 0.0
  %148 = vmatpush.msra.mxu0 0.0
  %149 = vmatpush.msra.mxu0 0.0
  %150 = vmatpush.msra.mxu0 0.0
  %151 = vmatpush.msra.mxu0 0.0
  %152 = vmatpush.msra.mxu0 0.0
  %153 = vmatpush.msra.mxu0 0.0
  %154 = vmatpush.msra.mxu0 %v117
  %155 = vmatpush.msra.mxu0 %v116
  %156 = vmatpush.msra.mxu0 %v115
  %157 = vmatmul.f32.gmra.mxu0 %v48
  %v158 = vpop.f32.mrf.mxu0
  %v159 = vadd.f32 %v136, %v158
  %160 = vmatmul.f32.gmra.mxu0 %v51
  %v161 = vpop.f32.mrf.mxu0
  %v162 = vadd.f32 %v139, %v161
  %163 = vdwg.mxu0
  %v164 = vld [vmem:[%s4] sm:$0xff]
  %v165 = vld [vmem:[%s4 + $0x8] sm:$0xff]
  %v166 = vld [vmem:[%s4 + $0x10] sm:$0xff]
  %v167 = vld [vmem:[%s4 + $0x18] sm:$0xff]
  %v168 = vld [vmem:[%s4 + $0x20] sm:$0xff]
  %v169 = vld [vmem:[%s4 + $0x28] sm:$0xff]
  %v170 = vld [vmem:[%s4 + $0x30] sm:$0xff]
  %v171 = vld [vmem:[%s4 + $0x38] sm:$0xff]
  %v172 = vld [vmem:[%s4 + $0x40] sm:$0xff]
  %v173 = vld [vmem:[%s4 + $0x48] sm:$0xff]
  %v174 = vld [vmem:[%s4 + $0x50] sm:$0xff]
  %v175 = vld [vmem:[%s4 + $0x58] sm:$0xff]
  %v176 = vld [vmem:[%s4 + $0x60] sm:$0xff]
  %v177 = vld [vmem:[%s4 + $0x68] sm:$0xff]
  %v178 = vld [vmem:[%s4 + $0x70] sm:$0xff]
  %v179 = vld [vmem:[%s4 + $0x78] sm:$0xff]
  %v180 = vld [vmem:[%s4 + $0x80] sm:$0xff]
  %v181 = vld [vmem:[%s4 + $0x88] sm:$0xff]
  %v182 = vld [vmem:[%s4 + $0x90] sm:$0xff]
  %183 = vmatpush.msra.mxu0 %v179
  %184 = vmatpush.msra.mxu0 %v178
  %185 = vmatpush.msra.mxu0 %v177
  %186 = vmatpush.msra.mxu0 %v176
  %187 = vmatpush.msra.mxu0 %v175
  %188 = vmatpush.msra.mxu0 %v174
  %189 = vmatpush.msra.mxu0 %v173
  %190 = vmatpush.msra.mxu0 %v172
  %191 = vmatpush.msra.mxu0 %v171
  %192 = vmatpush.msra.mxu0 %v170
  %193 = vmatpush.msra.mxu0 %v169
  %194 = vmatpush.msra.mxu0 %v168
  %195 = vmatpush.msra.mxu0 %v167
  %196 = vmatpush.msra.mxu0 %v166
  %197 = vmatpush.msra.mxu0 %v165
  %198 = vmatpush.msra.mxu0 %v164
  %199 = vmatmul.f32.gmra.mxu0 %v23
  %v200 = vpop.f32.mrf.mxu0
  %v201 = vadd.f32 0.0, %v200
  %202 = vmatmul.f32.gmra.mxu0 %v25
  %v203 = vpop.f32.mrf.mxu0
  %v204 = vadd.f32 0.0, %v203
  %205 = vdwg.mxu0
  %206 = vmatpush.msra.mxu0 0.0
  %207 = vmatpush.msra.mxu0 0.0
  %208 = vmatpush.msra.mxu0 0.0
  %209 = vmatpush.msra.mxu0 0.0
  %210 = vmatpush.msra.mxu0 0.0
  %211 = vmatpush.msra.mxu0 0.0
  %212 = vmatpush.msra.mxu0 0.0
  %213 = vmatpush.msra.mxu0 0.0
  %214 = vmatpush.msra.mxu0 0.0
  %215 = vmatpush.msra.mxu0 0.0
  %216 = vmatpush.msra.mxu0 0.0
  %217 = vmatpush.msra.mxu0 0.0
  %218 = vmatpush.msra.mxu0 0.0
  %219 = vmatpush.msra.mxu0 %v182
  %220 = vmatpush.msra.mxu0 %v181
  %221 = vmatpush.msra.mxu0 %v180
  %222 = vmatmul.f32.gmra.mxu0 %v48
  %v223 = vpop.f32.mrf.mxu0
  %v224 = vadd.f32 %v201, %v223
  %225 = vmatmul.f32.gmra.mxu0 %v51
  %v226 = vpop.f32.mrf.mxu0
  %v227 = vadd.f32 %v204, %v226
  %228 = vdwg.mxu0
  %v229 = vld [vmem:[%s5] sm:$0xff]
  %v230 = vld [vmem:[%s5 + $0x8] sm:$0xff]
  %v231 = vld [vmem:[%s5 + $0x10] sm:$0xff]
  %v232 = vld [vmem:[%s5 + $0x18] sm:$0xff]
  %v233 = vld [vmem:[%s5 + $0x20] sm:$0xff]
  %v234 = vld [vmem:[%s5 + $0x28] sm:$0xff]
  %v235 = vld [vmem:[%s5 + $0x30] sm:$0xff]
  %v236 = vld [vmem:[%s5 + $0x38] sm:$0xff]
  %v237 = vld [vmem:[%s5 + $0x40] sm:$0xff]
  %v238 = vld [vmem:[%s5 + $0x48] sm:$0xff]
  %v239 = vld [vmem:[%s5 + $0x50] sm:$0xff]
  %v240 = vld [vmem:[%s5 + $0x58] sm:$0xff]
  %v241 = vld [vmem:[%s5 + $0x60] sm:$0xff]
  %v242 = vld [vmem:[%s5 + $0x68] sm:$0xff]
  %v243 = vld [vmem:[%s5 + $0x70] sm:$0xff]
  %v244 = vld [vmem:[%s5 + $0x78] sm:$0xff]
  %v245 = vld [vmem:[%s5 + $0x80] sm:$0xff]
  %v246 = vld [vmem:[%s5 + $0x88] sm:$0xff]
  %v247 = vld [vmem:[%s5 + $0x90] sm:$0xff]
  %248 = vmatpush.msra.mxu0 %v244
  %249 = vmatpush.msra.mxu0 %v243
  %250 = vmatpush.msra.mxu0 %v242
  %251 = vmatpush.msra.mxu0 %v241
  %252 = vmatpush.msra.mxu0 %v240
  %253 = vmatpush.msra.mxu0 %v239
  %254 = vmatpush.msra.mxu0 %v238
  %255 = vmatpush.msra.mxu0 %v237
  %256 = vmatpush.msra.mxu0 %v236
  %257 = vmatpush.msra.mxu0 %v235
  %258 = vmatpush.msra.mxu0 %v234
  %259 = vmatpush.msra.mxu0 %v233
  %260 = vmatpush.msra.mxu0 %v232
  %261 = vmatpush.msra.mxu0 %v231
  %262 = vmatpush.msra.mxu0 %v230
  %263 = vmatpush.msra.mxu0 %v229
  %264 = vmatmul.f32.gmra.mxu0 %v23
  %v265 = vpop.f32.mrf.mxu0
  %v266 = vadd.f32 0.0, %v265
  %267 = vmatmul.f32.gmra.mxu0 %v25
  %v268 = vpop.f32.mrf.mxu0
  %v269 = vadd.f32 0.0, %v268
  %270 = vdwg.mxu0
  %271 = vmatpush.msra.mxu0 0.0
  %272 = vmatpush.msra.mxu0 0.0
  %273 = vmatpush.msra.mxu0 0.0
  %274 = vmatpush.msra.mxu0 0.0
  %275 = vmatpush.msra.mxu0 0.0
  %276 = vmatpush.msra.mxu0 0.0
  %277 = vmatpush.msra.mxu0 0.0
  %278 = vmatpush.msra.mxu0 0.0
  %279 = vmatpush.msra.mxu0 0.0
  %280 = vmatpush.msra.mxu0 0.0
  %281 = vmatpush.msra.mxu0 0.0
  %282 = vmatpush.msra.mxu0 0.0
  %283 = vmatpush.msra.mxu0 0.0
  %284 = vmatpush.msra.mxu0 %v247
  %285 = vmatpush.msra.mxu0 %v246
  %286 = vmatpush.msra.mxu0 %v245
  %287 = vmatmul.f32.gmra.mxu0 %v48
  %v288 = vpop.f32.mrf.mxu0
  %v289 = vadd.f32 %v266, %v288
  %290 = vmatmul.f32.gmra.mxu0 %v51
  %v291 = vpop.f32.mrf.mxu0
  %v292 = vadd.f32 %v269, %v291
  %293 = vdwg.mxu0
  %v294 = vmax.f32 %v94, %v159
  %v295 = vmax.f32 %v97, %v162
  %v296 = vmax.f32 %v224, %v289
  %v297 = vmax.f32 %v227, %v292
  %v298 = vmax.f32 %v294, %v296
  %v299 = vmax.f32 %v295, %v297
  %v300 = vld [vmem:[%s1] sm:$0xff]
  %v301 = vld [vmem:[%s1 + $0x8] sm:$0xff]
  %303 = vset.pattern.permute.xlu0 0
  %304 = vperm.xlu0 %303, %v300
  %v305 = vpop.permute.xlu0 %304
  %308 = vset.pattern.permute.xlu0 0
  %309 = vperm.xlu0 %308, %v301
  %v310 = vpop.permute.xlu0 %309
  %v312 = vadd.f32 %v298, %v305
  %v313 = vadd.f32 %v299, %v310
  %v314 = vmax.f32 %v312, 0.0
  %v315 = vmax.f32 %v313, 0.0
  %vm316 = vcmask 408576
  %317 = vst.msk [vmem:[%s6] sm:$0xff] %vm316, %v314
  %318 = vst.msk [vmem:[%s6 + $0x8] sm:$0xff] %vm316, %v315
  // Predicated region
  $region26: #{simple_cnn_header_forward.4} parent=0 // pred_check
    _
  $region27: #{simple_cnn_header_forward.4} parent=0 // pred_check_branch
    %320 = sbr.rel (0) target = $region29
  $region28: #{simple_cnn_header_forward.4} parent=0 // pred_region
    _
  $region29: #{simple_cnn_header_forward.4} parent=0 // pred_fallthru
    _
  // Predicated region
  $region30: #{simple_cnn_header_forward.4} parent=0 // pred_check
    _
  $region31: #{simple_cnn_header_forward.4} parent=0 // pred_check_branch
    %322 = sbr.rel (0) target = $region33
  $region32: #{simple_cnn_header_forward.4} parent=0 // pred_region
    _
  $region33: #{simple_cnn_header_forward.4} parent=0 // pred_fallthru
    _

// kernel: simple_cnn_header_forward.5
$region0: #{simple_cnn_header_forward.5}
  #allocation0 [shape = 'u32[]', space=smem, size = 0x4, offset = 0x4, fixed_abs, tag = 'smem constant byte address 0x4 - core index']
  #allocation1 [shape = 'u32[72,128]{1,0:T(1,128)}', space=vmem, size = 0x9000, scoped, tag = 'internal scratch']
  %s0 = inlined_call_operand.vmem [shape: f32[400,2], index: 0, kind: input, shape index: {}]
  %s1 = inlined_call_operand.vmem [shape: f32[120,400], index: 1, kind: input, shape index: {}]
  %s2 = inlined_call_operand.vmem [shape: f32[120,1], index: 2, kind: input, shape index: {}]
  %s3 = inlined_call_operand.vmem [shape: f32[84,120], index: 3, kind: input, shape index: {}]
  %s4 = inlined_call_operand.vmem [shape: f32[84,1], index: 4, kind: input, shape index: {}]
  %s5 = inlined_call_operand.vmem [shape: f32[84,2], index: 5, kind: output, shape index: {}]
  %s6 = sld [smem:[#allocation0]]
  $region30: #{simple_cnn_header_forward.5} parent=0
    _
  %s8 = ssub.s32 1, %s6
  %s9 = scalar_select 0, %s8, %s6
  // Predicated region
  $region2: #{simple_cnn_header_forward.5} parent=0 // pred_check
    _
  $region3: #{simple_cnn_header_forward.5} parent=0 // pred_check_branch
    %11 = sbr.rel (0) target = $region5
  $region4: #{simple_cnn_header_forward.5} parent=0 // pred_region
    _
  $region5: #{simple_cnn_header_forward.5} parent=0 // pred_fallthru
    _
  // Predicated region
  $region6: #{simple_cnn_header_forward.5} parent=0 // pred_check
    _
  $region7: #{simple_cnn_header_forward.5} parent=0 // pred_check_branch
    %13 = sbr.rel (0) target = $region9
  $region8: #{simple_cnn_header_forward.5} parent=0 // pred_region
    _
  $region9: #{simple_cnn_header_forward.5} parent=0 // pred_fallthru
    _
  // Predicated region
  $region10: #{simple_cnn_header_forward.5} parent=0 // pred_check
    _
  $region11: #{simple_cnn_header_forward.5} parent=0 // pred_check_branch
    %15 = sbr.rel (0) target = $region13
  $region12: #{simple_cnn_header_forward.5} parent=0 // pred_region
    _
  $region13: #{simple_cnn_header_forward.5} parent=0 // pred_fallthru
    _
  // Predicated region
  $region14: #{simple_cnn_header_forward.5} parent=0 // pred_check
    _
  $region15: #{simple_cnn_header_forward.5} parent=0 // pred_check_branch
    %17 = sbr.rel (0) target = $region17
  $region16: #{simple_cnn_header_forward.5} parent=0 // pred_region
    _
  $region17: #{simple_cnn_header_forward.5} parent=0 // pred_fallthru
    _
  // Predicated region
  $region18: #{simple_cnn_header_forward.5} parent=0 // pred_check
    _
  $region19: #{simple_cnn_header_forward.5} parent=0 // pred_check_branch
    %19 = sbr.rel (0) target = $region21
  $region20: #{simple_cnn_header_forward.5} parent=0 // pred_region
    _
  $region21: #{simple_cnn_header_forward.5} parent=0 // pred_fallthru
    _
  %v20 = vld [vmem:[%s1] sm:$0xff]
  %v21 = vld [vmem:[%s1 + $0x8] sm:$0xff]
  %v22 = vld [vmem:[%s1 + $0x10] sm:$0xff]
  %v23 = vld [vmem:[%s1 + $0x18] sm:$0xff]
  %v24 = vld [vmem:[%s1 + $0x20] sm:$0xff]
  %v25 = vld [vmem:[%s1 + $0x28] sm:$0xff]
  %v26 = vld [vmem:[%s1 + $0x30] sm:$0xff]
  %v27 = vld [vmem:[%s1 + $0x38] sm:$0xff]
  %v28 = vld [vmem:[%s1 + $0x40] sm:$0xff]
  %v29 = vld [vmem:[%s1 + $0x48] sm:$0xff]
  %v30 = vld [vmem:[%s1 + $0x50] sm:$0xff]
  %v31 = vld [vmem:[%s1 + $0x58] sm:$0xff]
  %v32 = vld [vmem:[%s1 + $0x60] sm:$0xff]
  %v33 = vld [vmem:[%s1 + $0x68] sm:$0xff]
  %v34 = vld [vmem:[%s1 + $0x70] sm:$0xff]
  %v35 = vld [vmem:[%s1 + $0x78] sm:$0xff]
  %v36 = vld [vmem:[%s1 + $0x80] sm:$0xff]
  %v37 = vld [vmem:[%s1 + $0x88] sm:$0xff]
  %v38 = vld [vmem:[%s1 + $0x90] sm:$0xff]
  %v39 = vld [vmem:[%s1 + $0x98] sm:$0xff]
  %v40 = vld [vmem:[%s1 + $0xa0] sm:$0xff]
  %v41 = vld [vmem:[%s1 + $0xa8] sm:$0xff]
  %v42 = vld [vmem:[%s1 + $0xb0] sm:$0xff]
  %v43 = vld [vmem:[%s1 + $0xb8] sm:$0xff]
  %v44 = vld [vmem:[%s1 + $0xc0] sm:$0xff]
  %v45 = vld [vmem:[%s1 + $0xc8] sm:$0xff]
  %v46 = vld [vmem:[%s1 + $0xd0] sm:$0xff]
  %v47 = vld [vmem:[%s1 + $0xd8] sm:$0xff]
  %v48 = vld [vmem:[%s1 + $0xe0] sm:$0xff]
  %v49 = vld [vmem:[%s1 + $0xe8] sm:$0xff]
  %v50 = vld [vmem:[%s1 + $0xf0] sm:$0xff]
  %v51 = vld [vmem:[%s1 + $0xf8] sm:$0xff]
  %v52 = vld [vmem:[%s1 + $0x100] sm:$0xff]
  %v53 = vld [vmem:[%s1 + $0x108] sm:$0xff]
  %v54 = vld [vmem:[%s1 + $0x110] sm:$0xff]
  %v55 = vld [vmem:[%s1 + $0x118] sm:$0xff]
  %v56 = vld [vmem:[%s1 + $0x120] sm:$0xff]
  %v57 = vld [vmem:[%s1 + $0x128] sm:$0xff]
  %v58 = vld [vmem:[%s1 + $0x130] sm:$0xff]
  %v59 = vld [vmem:[%s1 + $0x138] sm:$0xff]
  %v60 = vld [vmem:[%s1 + $0x140] sm:$0xff]
  %v61 = vld [vmem:[%s1 + $0x148] sm:$0xff]
  %v62 = vld [vmem:[%s1 + $0x150] sm:$0xff]
  %v63 = vld [vmem:[%s1 + $0x158] sm:$0xff]
  %v64 = vld [vmem:[%s1 + $0x160] sm:$0xff]
  %v65 = vld [vmem:[%s1 + $0x168] sm:$0xff]
  %v66 = vld [vmem:[%s1 + $0x170] sm:$0xff]
  %v67 = vld [vmem:[%s1 + $0x178] sm:$0xff]
  %v68 = vld [vmem:[%s1 + $0x180] sm:$0xff]
  %v69 = vld [vmem:[%s1 + $0x188] sm:$0xff]
  %v70 = vld [vmem:[%s1 + $0x190] sm:$0xff]
  %v71 = vld [vmem:[%s1 + $0x198] sm:$0xff]
  %v72 = vld [vmem:[%s1 + $0x1a0] sm:$0xff]
  %v73 = vld [vmem:[%s1 + $0x1a8] sm:$0xff]
  %v74 = vld [vmem:[%s1 + $0x1b0] sm:$0xff]
  %v75 = vld [vmem:[%s1 + $0x1b8] sm:$0xff]
  %v76 = vld [vmem:[%s1 + $0x1c0] sm:$0xff]
  %v77 = vld [vmem:[%s1 + $0x1c8] sm:$0xff]
  %v78 = vld [vmem:[%s1 + $0x1d0] sm:$0xff]
  %v79 = vld [vmem:[%s1 + $0x1d8] sm:$0xff]
  %v80 = vld [vmem:[%s0] sm:$0xff]
  %v81 = vld [vmem:[%s0 + $0x8] sm:$0xff]
  %v82 = vld [vmem:[%s0 + $0x10] sm:$0xff]
  %v83 = vld [vmem:[%s0 + $0x18] sm:$0xff]
  %v84 = vld [vmem:[%s0 + $0x20] sm:$0xff]
  %v85 = vld [vmem:[%s0 + $0x28] sm:$0xff]
  %v86 = vld [vmem:[%s0 + $0x30] sm:$0xff]
  %v87 = vld [vmem:[%s0 + $0x38] sm:$0xff]
  %v88 = vld [vmem:[%s0 + $0x40] sm:$0xff]
  %v89 = vld [vmem:[%s0 + $0x48] sm:$0xff]
  %v90 = vld [vmem:[%s0 + $0x50] sm:$0xff]
  %v91 = vld [vmem:[%s0 + $0x58] sm:$0xff]
  %v92 = vld [vmem:[%s0 + $0x60] sm:$0xff]
  %v93 = vld [vmem:[%s0 + $0x68] sm:$0xff]
  %v94 = vld [vmem:[%s0 + $0x70] sm:$0xff]
  %v95 = vld [vmem:[%s0 + $0x78] sm:$0xff]
  %v96 = vld [vmem:[%s0 + $0x80] sm:$0xff]
  %v97 = vld [vmem:[%s0 + $0x88] sm:$0xff]
  %v98 = vld [vmem:[%s0 + $0x90] sm:$0xff]
  %v99 = vld [vmem:[%s0 + $0x98] sm:$0xff]
  %v100 = vld [vmem:[%s0 + $0xa0] sm:$0xff]
  %v101 = vld [vmem:[%s0 + $0xa8] sm:$0xff]
  %v102 = vld [vmem:[%s0 + $0xb0] sm:$0xff]
  %v103 = vld [vmem:[%s0 + $0xb8] sm:$0xff]
  %v104 = vld [vmem:[%s0 + $0xc0] sm:$0xff]
  %v105 = vld [vmem:[%s0 + $0xc8] sm:$0xff]
  %v106 = vld [vmem:[%s0 + $0xd0] sm:$0xff]
  %v107 = vld [vmem:[%s0 + $0xd8] sm:$0xff]
  %v108 = vld [vmem:[%s0 + $0xe0] sm:$0xff]
  %v109 = vld [vmem:[%s0 + $0xe8] sm:$0xff]
  %v110 = vld [vmem:[%s0 + $0xf0] sm:$0xff]
  %v111 = vld [vmem:[%s0 + $0xf8] sm:$0xff]
  %v112 = vld [vmem:[%s0 + $0x100] sm:$0xff]
  %v113 = vld [vmem:[%s0 + $0x108] sm:$0xff]
  %v114 = vld [vmem:[%s0 + $0x110] sm:$0xff]
  %v115 = vld [vmem:[%s0 + $0x118] sm:$0xff]
  %v116 = vld [vmem:[%s0 + $0x120] sm:$0xff]
  %v117 = vld [vmem:[%s0 + $0x128] sm:$0xff]
  %v118 = vld [vmem:[%s0 + $0x130] sm:$0xff]
  %v119 = vld [vmem:[%s0 + $0x138] sm:$0xff]
  %v120 = vld [vmem:[%s0 + $0x140] sm:$0xff]
  %v121 = vld [vmem:[%s0 + $0x148] sm:$0xff]
  %v122 = vld [vmem:[%s0 + $0x150] sm:$0xff]
  %v123 = vld [vmem:[%s0 + $0x158] sm:$0xff]
  %v124 = vld [vmem:[%s0 + $0x160] sm:$0xff]
  %v125 = vld [vmem:[%s0 + $0x168] sm:$0xff]
  %v126 = vld [vmem:[%s0 + $0x170] sm:$0xff]
  %v127 = vld [vmem:[%s0 + $0x178] sm:$0xff]
  %v128 = vld [vmem:[%s0 + $0x180] sm:$0xff]
  %v129 = vld [vmem:[%s0 + $0x188] sm:$0xff]
  %v130 = vld [vmem:[%s2] sm:$0xff]
  %v131 = vld [vmem:[%s2 + $0x8] sm:$0xff]
  %v132 = vld [vmem:[%s2 + $0x10] sm:$0xff]
  %v133 = vld [vmem:[%s2 + $0x18] sm:$0xff]
  %v134 = vld [vmem:[%s2 + $0x20] sm:$0xff]
  %v135 = vld [vmem:[%s2 + $0x28] sm:$0xff]
  %v136 = vld [vmem:[%s2 + $0x30] sm:$0xff]
  %v137 = vld [vmem:[%s2 + $0x38] sm:$0xff]
  %v138 = vld [vmem:[%s2 + $0x40] sm:$0xff]
  %v139 = vld [vmem:[%s2 + $0x48] sm:$0xff]
  %v140 = vld [vmem:[%s2 + $0x50] sm:$0xff]
  %v141 = vld [vmem:[%s2 + $0x58] sm:$0xff]
  %v142 = vld [vmem:[%s2 + $0x60] sm:$0xff]
  %v143 = vld [vmem:[%s2 + $0x68] sm:$0xff]
  %v144 = vld [vmem:[%s2 + $0x70] sm:$0xff]
  %146 = vset.pattern.permute.xlu0 0
  %147 = vperm.xlu0 %146, %v130
  %v148 = vpop.permute.xlu0 %147
  %151 = vset.pattern.permute.xlu0 0
  %152 = vperm.xlu0 %151, %v131
  %v153 = vpop.permute.xlu0 %152
  %156 = vset.pattern.permute.xlu0 0
  %157 = vperm.xlu0 %156, %v132
  %v158 = vpop.permute.xlu0 %157
  %161 = vset.pattern.permute.xlu0 0
  %162 = vperm.xlu0 %161, %v133
  %v163 = vpop.permute.xlu0 %162
  %166 = vset.pattern.permute.xlu0 0
  %167 = vperm.xlu0 %166, %v134
  %v168 = vpop.permute.xlu0 %167
  %171 = vset.pattern.permute.xlu0 0
  %172 = vperm.xlu0 %171, %v135
  %v173 = vpop.permute.xlu0 %172
  %176 = vset.pattern.permute.xlu0 0
  %177 = vperm.xlu0 %176, %v136
  %v178 = vpop.permute.xlu0 %177
  %181 = vset.pattern.permute.xlu0 0
  %182 = vperm.xlu0 %181, %v137
  %v183 = vpop.permute.xlu0 %182
  %186 = vset.pattern.permute.xlu0 0
  %187 = vperm.xlu0 %186, %v138
  %v188 = vpop.permute.xlu0 %187
  %191 = vset.pattern.permute.xlu0 0
  %192 = vperm.xlu0 %191, %v139
  %v193 = vpop.permute.xlu0 %192
  %196 = vset.pattern.permute.xlu0 0
  %197 = vperm.xlu0 %196, %v140
  %v198 = vpop.permute.xlu0 %197
  %201 = vset.pattern.permute.xlu0 0
  %202 = vperm.xlu0 %201, %v141
  %v203 = vpop.permute.xlu0 %202
  %206 = vset.pattern.permute.xlu0 0
  %207 = vperm.xlu0 %206, %v142
  %v208 = vpop.permute.xlu0 %207
  %211 = vset.pattern.permute.xlu0 0
  %212 = vperm.xlu0 %211, %v143
  %v213 = vpop.permute.xlu0 %212
  %216 = vset.pattern.permute.xlu0 0
  %217 = vperm.xlu0 %216, %v144
  %v218 = vpop.permute.xlu0 %217
  %vm220 = vcmask 130048
  %v222 = vsel %vm220, %v23, 0
  %v225 = vsel %vm220, %v27, 0
  %v228 = vsel %vm220, %v31, 0
  %v231 = vsel %vm220, %v35, 0
  %v234 = vsel %vm220, %v39, 0
  %v237 = vsel %vm220, %v43, 0
  %v240 = vsel %vm220, %v47, 0
  %v243 = vsel %vm220, %v51, 0
  %v246 = vsel %vm220, %v55, 0
  %v249 = vsel %vm220, %v59, 0
  %v252 = vsel %vm220, %v63, 0
  %v255 = vsel %vm220, %v67, 0
  %v258 = vsel %vm220, %v71, 0
  %v261 = vsel %vm220, %v75, 0
  %v264 = vsel %vm220, %v79, 0
  %266 = vmatpush.msra.mxu0 %v95
  %267 = vmatpush.msra.mxu0 %v94
  %268 = vmatpush.msra.mxu0 %v93
  %269 = vmatpush.msra.mxu0 %v92
  %270 = vmatpush.msra.mxu0 %v91
  %271 = vmatpush.msra.mxu0 %v90
  %272 = vmatpush.msra.mxu0 %v89
  %273 = vmatpush.msra.mxu0 %v88
  %274 = vmatpush.msra.mxu0 %v87
  %275 = vmatpush.msra.mxu0 %v86
  %276 = vmatpush.msra.mxu0 %v85
  %277 = vmatpush.msra.mxu0 %v84
  %278 = vmatpush.msra.mxu0 %v83
  %279 = vmatpush.msra.mxu0 %v82
  %280 = vmatpush.msra.mxu0 %v81
  %281 = vmatpush.msra.mxu0 %v80
  %282 = vmatmul.f32.gmra.mxu0 %v20
  %v283 = vpop.f32.mrf.mxu0
  %v284 = vadd.f32 %v148, %v283
  %285 = vmatmul.f32.gmra.mxu0 %v24
  %v286 = vpop.f32.mrf.mxu0
  %v287 = vadd.f32 %v153, %v286
  %288 = vmatmul.f32.gmra.mxu0 %v28
  %v289 = vpop.f32.mrf.mxu0
  %v290 = vadd.f32 %v158, %v289
  %291 = vmatmul.f32.gmra.mxu0 %v32
  %v292 = vpop.f32.mrf.mxu0
  %v293 = vadd.f32 %v163, %v292
  %294 = vmatmul.f32.gmra.mxu0 %v36
  %v295 = vpop.f32.mrf.mxu0
  %v296 = vadd.f32 %v168, %v295
  %297 = vmatmul.f32.gmra.mxu0 %v40
  %v298 = vpop.f32.mrf.mxu0
  %v299 = vadd.f32 %v173, %v298
  %300 = vmatmul.f32.gmra.mxu0 %v44
  %v301 = vpop.f32.mrf.mxu0
  %v302 = vadd.f32 %v178, %v301
  %303 = vmatmul.f32.gmra.mxu0 %v48
  %v304 = vpop.f32.mrf.mxu0
  %v305 = vadd.f32 %v183, %v304
  %306 = vmatmul.f32.gmra.mxu0 %v52
  %v307 = vpop.f32.mrf.mxu0
  %v308 = vadd.f32 %v188, %v307
  %309 = vmatmul.f32.gmra.mxu0 %v56
  %v310 = vpop.f32.mrf.mxu0
  %v311 = vadd.f32 %v193, %v310
  %312 = vmatmul.f32.gmra.mxu0 %v60
  %v313 = vpop.f32.mrf.mxu0
  %v314 = vadd.f32 %v198, %v313
  %315 = vmatmul.f32.gmra.mxu0 %v64
  %v316 = vpop.f32.mrf.mxu0
  %v317 = vadd.f32 %v203, %v316
  %318 = vmatmul.f32.gmra.mxu0 %v68
  %v319 = vpop.f32.mrf.mxu0
  %v320 = vadd.f32 %v208, %v319
  %321 = vmatmul.f32.gmra.mxu0 %v72
  %v322 = vpop.f32.mrf.mxu0
  %v323 = vadd.f32 %v213, %v322
  %324 = vmatmul.f32.gmra.mxu0 %v76
  %v325 = vpop.f32.mrf.mxu0
  %v326 = vadd.f32 %v218, %v325
  %327 = vdwg.mxu0
  %328 = vmatpush.msra.mxu0 %v111
  %329 = vmatpush.msra.mxu0 %v110
  %330 = vmatpush.msra.mxu0 %v109
  %331 = vmatpush.msra.mxu0 %v108
  %332 = vmatpush.msra.mxu0 %v107
  %333 = vmatpush.msra.mxu0 %v106
  %334 = vmatpush.msra.mxu0 %v105
  %335 = vmatpush.msra.mxu0 %v104
  %336 = vmatpush.msra.mxu0 %v103
  %337 = vmatpush.msra.mxu0 %v102
  %338 = vmatpush.msra.mxu0 %v101
  %339 = vmatpush.msra.mxu0 %v100
  %340 = vmatpush.msra.mxu0 %v99
  %341 = vmatpush.msra.mxu0 %v98
  %342 = vmatpush.msra.mxu0 %v97
  %343 = vmatpush.msra.mxu0 %v96
  %344 = vmatmul.f32.gmra.mxu0 %v21
  %v345 = vpop.f32.mrf.mxu0
  %v346 = vadd.f32 %v284, %v345
  %347 = vmatmul.f32.gmra.mxu0 %v25
  %v348 = vpop.f32.mrf.mxu0
  %v349 = vadd.f32 %v287, %v348
  %350 = vmatmul.f32.gmra.mxu0 %v29
  %v351 = vpop.f32.mrf.mxu0
  %v352 = vadd.f32 %v290, %v351
  %353 = vmatmul.f32.gmra.mxu0 %v33
  %v354 = vpop.f32.mrf.mxu0
  %v355 = vadd.f32 %v293, %v354
  %356 = vmatmul.f32.gmra.mxu0 %v37
  %v357 = vpop.f32.mrf.mxu0
  %v358 = vadd.f32 %v296, %v357
  %359 = vmatmul.f32.gmra.mxu0 %v41
  %v360 = vpop.f32.mrf.mxu0
  %v361 = vadd.f32 %v299, %v360
  %362 = vmatmul.f32.gmra.mxu0 %v45
  %v363 = vpop.f32.mrf.mxu0
  %v364 = vadd.f32 %v302, %v363
  %365 = vmatmul.f32.gmra.mxu0 %v49
  %v366 = vpop.f32.mrf.mxu0
  %v367 = vadd.f32 %v305, %v366
  %368 = vmatmul.f32.gmra.mxu0 %v53
  %v369 = vpop.f32.mrf.mxu0
  %v370 = vadd.f32 %v308, %v369
  %371 = vmatmul.f32.gmra.mxu0 %v57
  %v372 = vpop.f32.mrf.mxu0
  %v373 = vadd.f32 %v311, %v372
  %374 = vmatmul.f32.gmra.mxu0 %v61
  %v375 = vpop.f32.mrf.mxu0
  %v376 = vadd.f32 %v314, %v375
  %377 = vmatmul.f32.gmra.mxu0 %v65
  %v378 = vpop.f32.mrf.mxu0
  %v379 = vadd.f32 %v317, %v378
  %380 = vmatmul.f32.gmra.mxu0 %v69
  %v381 = vpop.f32.mrf.mxu0
  %v382 = vadd.f32 %v320, %v381
  %383 = vmatmul.f32.gmra.mxu0 %v73
  %v384 = vpop.f32.mrf.mxu0
  %v385 = vadd.f32 %v323, %v384
  %386 = vmatmul.f32.gmra.mxu0 %v77
  %v387 = vpop.f32.mrf.mxu0
  %v388 = vadd.f32 %v326, %v387
  %389 = vdwg.mxu0
  %390 = vmatpush.msra.mxu0 %v127
  %391 = vmatpush.msra.mxu0 %v126
  %392 = vmatpush.msra.mxu0 %v125
  %393 = vmatpush.msra.mxu0 %v124
  %394 = vmatpush.msra.mxu0 %v123
  %395 = vmatpush.msra.mxu0 %v122
  %396 = vmatpush.msra.mxu0 %v121
  %397 = vmatpush.msra.mxu0 %v120
  %398 = vmatpush.msra.mxu0 %v119
  %399 = vmatpush.msra.mxu0 %v118
  %400 = vmatpush.msra.mxu0 %v117
  %401 = vmatpush.msra.mxu0 %v116
  %402 = vmatpush.msra.mxu0 %v115
  %403 = vmatpush.msra.mxu0 %v114
  %404 = vmatpush.msra.mxu0 %v113
  %405 = vmatpush.msra.mxu0 %v112
  %406 = vmatmul.f32.gmra.mxu0 %v22
  %v407 = vpop.f32.mrf.mxu0
  %v408 = vadd.f32 %v346, %v407
  %409 = vmatmul.f32.gmra.mxu0 %v26
  %v410 = vpop.f32.mrf.mxu0
  %v411 = vadd.f32 %v349, %v410
  %412 = vmatmul.f32.gmra.mxu0 %v30
  %v413 = vpop.f32.mrf.mxu0
  %v414 = vadd.f32 %v352, %v413
  %415 = vmatmul.f32.gmra.mxu0 %v34
  %v416 = vpop.f32.mrf.mxu0
  %v417 = vadd.f32 %v355, %v416
  %418 = vmatmul.f32.gmra.mxu0 %v38
  %v419 = vpop.f32.mrf.mxu0
  %v420 = vadd.f32 %v358, %v419
  %421 = vmatmul.f32.gmra.mxu0 %v42
  %v422 = vpop.f32.mrf.mxu0
  %v423 = vadd.f32 %v361, %v422
  %424 = vmatmul.f32.gmra.mxu0 %v46
  %v425 = vpop.f32.mrf.mxu0
  %v426 = vadd.f32 %v364, %v425
  %427 = vmatmul.f32.gmra.mxu0 %v50
  %v428 = vpop.f32.mrf.mxu0
  %v429 = vadd.f32 %v367, %v428
  %430 = vmatmul.f32.gmra.mxu0 %v54
  %v431 = vpop.f32.mrf.mxu0
  %v432 = vadd.f32 %v370, %v431
  %433 = vmatmul.f32.gmra.mxu0 %v58
  %v434 = vpop.f32.mrf.mxu0
  %v435 = vadd.f32 %v373, %v434
  %436 = vmatmul.f32.gmra.mxu0 %v62
  %v437 = vpop.f32.mrf.mxu0
  %v438 = vadd.f32 %v376, %v437
  %439 = vmatmul.f32.gmra.mxu0 %v66
  %v440 = vpop.f32.mrf.mxu0
  %v441 = vadd.f32 %v379, %v440
  %442 = vmatmul.f32.gmra.mxu0 %v70
  %v443 = vpop.f32.mrf.mxu0
  %v444 = vadd.f32 %v382, %v443
  %445 = vmatmul.f32.gmra.mxu0 %v74
  %v446 = vpop.f32.mrf.mxu0
  %v447 = vadd.f32 %v385, %v446
  %448 = vmatmul.f32.gmra.mxu0 %v78
  %v449 = vpop.f32.mrf.mxu0
  %v450 = vadd.f32 %v388, %v449
  %451 = vdwg.mxu0
  %452 = vmatpush.msra.mxu0 0.0
  %453 = vmatpush.msra.mxu0 0.0
  %454 = vmatpush.msra.mxu0 0.0
  %455 = vmatpush.msra.mxu0 0.0
  %456 = vmatpush.msra.mxu0 0.0
  %457 = vmatpush.msra.mxu0 0.0
  %458 = vmatpush.msra.mxu0 0.0
  %459 = vmatpush.msra.mxu0 0.0
  %460 = vmatpush.msra.mxu0 0.0
  %461 = vmatpush.msra.mxu0 0.0
  %462 = vmatpush.msra.mxu0 0.0
  %463 = vmatpush.msra.mxu0 0.0
  %464 = vmatpush.msra.mxu0 0.0
  %465 = vmatpush.msra.mxu0 0.0
  %466 = vmatpush.msra.mxu0 %v129
  %467 = vmatpush.msra.mxu0 %v128
  %468 = vmatmul.f32.gmra.mxu0 %v222
  %v469 = vpop.f32.mrf.mxu0
  %v470 = vadd.f32 %v408, %v469
  %471 = vmatmul.f32.gmra.mxu0 %v225
  %v472 = vpop.f32.mrf.mxu0
  %v473 = vadd.f32 %v411, %v472
  %474 = vmatmul.f32.gmra.mxu0 %v228
  %v475 = vpop.f32.mrf.mxu0
  %v476 = vadd.f32 %v414, %v475
  %477 = vmatmul.f32.gmra.mxu0 %v231
  %v478 = vpop.f32.mrf.mxu0
  %v479 = vadd.f32 %v417, %v478
  %480 = vmatmul.f32.gmra.mxu0 %v234
  %v481 = vpop.f32.mrf.mxu0
  %v482 = vadd.f32 %v420, %v481
  %483 = vmatmul.f32.gmra.mxu0 %v237
  %v484 = vpop.f32.mrf.mxu0
  %v485 = vadd.f32 %v423, %v484
  %486 = vmatmul.f32.gmra.mxu0 %v240
  %v487 = vpop.f32.mrf.mxu0
  %v488 = vadd.f32 %v426, %v487
  %489 = vmatmul.f32.gmra.mxu0 %v243
  %v490 = vpop.f32.mrf.mxu0
  %v491 = vadd.f32 %v429, %v490
  %492 = vmatmul.f32.gmra.mxu0 %v246
  %v493 = vpop.f32.mrf.mxu0
  %v494 = vadd.f32 %v432, %v493
  %495 = vmatmul.f32.gmra.mxu0 %v249
  %v496 = vpop.f32.mrf.mxu0
  %v497 = vadd.f32 %v435, %v496
  %498 = vmatmul.f32.gmra.mxu0 %v252
  %v499 = vpop.f32.mrf.mxu0
  %v500 = vadd.f32 %v438, %v499
  %501 = vmatmul.f32.gmra.mxu0 %v255
  %v502 = vpop.f32.mrf.mxu0
  %v503 = vadd.f32 %v441, %v502
  %504 = vmatmul.f32.gmra.mxu0 %v258
  %v505 = vpop.f32.mrf.mxu0
  %v506 = vadd.f32 %v444, %v505
  %507 = vmatmul.f32.gmra.mxu0 %v261
  %v508 = vpop.f32.mrf.mxu0
  %v509 = vadd.f32 %v447, %v508
  %510 = vmatmul.f32.gmra.mxu0 %v264
  %v511 = vpop.f32.mrf.mxu0
  %v512 = vadd.f32 %v450, %v511
  %513 = vdwg.mxu0
  %v514 = vmax.f32 %v470, 0.0
  %v515 = vmax.f32 %v473, 0.0
  %v516 = vmax.f32 %v476, 0.0
  %v517 = vmax.f32 %v479, 0.0
  %v518 = vmax.f32 %v482, 0.0
  %v519 = vmax.f32 %v485, 0.0
  %v520 = vmax.f32 %v488, 0.0
  %v521 = vmax.f32 %v491, 0.0
  %v522 = vmax.f32 %v494, 0.0
  %v523 = vmax.f32 %v497, 0.0
  %v524 = vmax.f32 %v500, 0.0
  %v525 = vmax.f32 %v503, 0.0
  %v526 = vmax.f32 %v506, 0.0
  %v527 = vmax.f32 %v509, 0.0
  %v528 = vmax.f32 %v512, 0.0
  %v529 = vld [vmem:[%s3] sm:$0xff]
  %v530 = vld [vmem:[%s3 + $0x8] sm:$0xff]
  %v531 = vld [vmem:[%s3 + $0x10] sm:$0xff]
  %v532 = vld [vmem:[%s3 + $0x18] sm:$0xff]
  %v533 = vld [vmem:[%s3 + $0x20] sm:$0xff]
  %v534 = vld [vmem:[%s3 + $0x28] sm:$0xff]
  %v535 = vld [vmem:[%s3 + $0x30] sm:$0xff]
  %v536 = vld [vmem:[%s3 + $0x38] sm:$0xff]
  %v537 = vld [vmem:[%s3 + $0x40] sm:$0xff]
  %v538 = vld [vmem:[%s3 + $0x48] sm:$0xff]
  %v539 = vld [vmem:[%s3 + $0x50] sm:$0xf]
  %v540 = vld [vmem:[%s4] sm:$0xff]
  %v541 = vld [vmem:[%s4 + $0x8] sm:$0xff]
  %v542 = vld [vmem:[%s4 + $0x10] sm:$0xff]
  %v543 = vld [vmem:[%s4 + $0x18] sm:$0xff]
  %v544 = vld [vmem:[%s4 + $0x20] sm:$0xff]
  %v545 = vld [vmem:[%s4 + $0x28] sm:$0xff]
  %v546 = vld [vmem:[%s4 + $0x30] sm:$0xff]
  %v547 = vld [vmem:[%s4 + $0x38] sm:$0xff]
  %v548 = vld [vmem:[%s4 + $0x40] sm:$0xff]
  %v549 = vld [vmem:[%s4 + $0x48] sm:$0xff]
  %v550 = vld [vmem:[%s4 + $0x50] sm:$0xf]
  %552 = vset.pattern.permute.xlu0 0
  %553 = vperm.xlu0 %552, %v540
  %v554 = vpop.permute.xlu0 %553
  %557 = vset.pattern.permute.xlu0 0
  %558 = vperm.xlu0 %557, %v541
  %v559 = vpop.permute.xlu0 %558
  %562 = vset.pattern.permute.xlu0 0
  %563 = vperm.xlu0 %562, %v542
  %v564 = vpop.permute.xlu0 %563
  %567 = vset.pattern.permute.xlu0 0
  %568 = vperm.xlu0 %567, %v543
  %v569 = vpop.permute.xlu0 %568
  %572 = vset.pattern.permute.xlu0 0
  %573 = vperm.xlu0 %572, %v544
  %v574 = vpop.permute.xlu0 %573
  %577 = vset.pattern.permute.xlu0 0
  %578 = vperm.xlu0 %577, %v545
  %v579 = vpop.permute.xlu0 %578
  %582 = vset.pattern.permute.xlu0 0
  %583 = vperm.xlu0 %582, %v546
  %v584 = vpop.permute.xlu0 %583
  %587 = vset.pattern.permute.xlu0 0
  %588 = vperm.xlu0 %587, %v547
  %v589 = vpop.permute.xlu0 %588
  %592 = vset.pattern.permute.xlu0 0
  %593 = vperm.xlu0 %592, %v548
  %v594 = vpop.permute.xlu0 %593
  %597 = vset.pattern.permute.xlu0 0
  %598 = vperm.xlu0 %597, %v549
  %v599 = vpop.permute.xlu0 %598
  %602 = vset.pattern.permute.xlu0 0
  %603 = vperm.xlu0 %602, %v550
  %v604 = vpop.permute.xlu0 %603
  %vm606 = vcmask 982016
  %v608 = vsel %vm606, %v529, 0
  %v611 = vsel %vm606, %v530, 0
  %v614 = vsel %vm606, %v531, 0
  %v617 = vsel %vm606, %v532, 0
  %v620 = vsel %vm606, %v533, 0
  %v623 = vsel %vm606, %v534, 0
  %v626 = vsel %vm606, %v535, 0
  %v629 = vsel %vm606, %v536, 0
  %v632 = vsel %vm606, %v537, 0
  %v635 = vsel %vm606, %v538, 0
  %v638 = vsel %vm606, %v539, 0
  %640 = vmatpush.msra.mxu0 0.0
  %641 = vmatpush.msra.mxu0 %v528
  %642 = vmatpush.msra.mxu0 %v527
  %643 = vmatpush.msra.mxu0 %v526
  %644 = vmatpush.msra.mxu0 %v525
  %645 = vmatpush.msra.mxu0 %v524
  %646 = vmatpush.msra.mxu0 %v523
  %647 = vmatpush.msra.mxu0 %v522
  %648 = vmatpush.msra.mxu0 %v521
  %649 = vmatpush.msra.mxu0 %v520
  %650 = vmatpush.msra.mxu0 %v519
  %651 = vmatpush.msra.mxu0 %v518
  %652 = vmatpush.msra.mxu0 %v517
  %653 = vmatpush.msra.mxu0 %v516
  %654 = vmatpush.msra.mxu0 %v515
  %655 = vmatpush.msra.mxu0 %v514
  %656 = vmatmul.f32.gmra.mxu0 %v608
  %v657 = vpop.f32.mrf.mxu0
  %v658 = vadd.f32 %v554, %v657
  %659 = vmatmul.f32.gmra.mxu0 %v611
  %v660 = vpop.f32.mrf.mxu0
  %v661 = vadd.f32 %v559, %v660
  %662 = vmatmul.f32.gmra.mxu0 %v614
  %v663 = vpop.f32.mrf.mxu0
  %v664 = vadd.f32 %v564, %v663
  %665 = vmatmul.f32.gmra.mxu0 %v617
  %v666 = vpop.f32.mrf.mxu0
  %v667 = vadd.f32 %v569, %v666
  %668 = vmatmul.f32.gmra.mxu0 %v620
  %v669 = vpop.f32.mrf.mxu0
  %v670 = vadd.f32 %v574, %v669
  %671 = vmatmul.f32.gmra.mxu0 %v623
  %v672 = vpop.f32.mrf.mxu0
  %v673 = vadd.f32 %v579, %v672
  %674 = vmatmul.f32.gmra.mxu0 %v626
  %v675 = vpop.f32.mrf.mxu0
  %v676 = vadd.f32 %v584, %v675
  %677 = vmatmul.f32.gmra.mxu0 %v629
  %v678 = vpop.f32.mrf.mxu0
  %v679 = vadd.f32 %v589, %v678
  %680 = vmatmul.f32.gmra.mxu0 %v632
  %v681 = vpop.f32.mrf.mxu0
  %v682 = vadd.f32 %v594, %v681
  %683 = vmatmul.f32.gmra.mxu0 %v635
  %v684 = vpop.f32.mrf.mxu0
  %v685 = vadd.f32 %v599, %v684
  %686 = vmatmul.f32.gmra.mxu0 %v638
  %v687 = vpop.f32.mrf.mxu0
  %v688 = vadd.f32 %v604, %v687
  %689 = vdwg.mxu0
  %v690 = vmax.f32 %v658, 0.0
  %v691 = vmax.f32 %v661, 0.0
  %v692 = vmax.f32 %v664, 0.0
  %v693 = vmax.f32 %v667, 0.0
  %v694 = vmax.f32 %v670, 0.0
  %v695 = vmax.f32 %v673, 0.0
  %v696 = vmax.f32 %v676, 0.0
  %v697 = vmax.f32 %v679, 0.0
  %v698 = vmax.f32 %v682, 0.0
  %v699 = vmax.f32 %v685, 0.0
  %v700 = vmax.f32 %v688, 0.0
  %vm701 = vcmask 15360
  %702 = vst.msk [vmem:[%s5] sm:$0xff] %vm701, %v690
  %703 = vst.msk [vmem:[%s5 + $0x8] sm:$0xff] %vm701, %v691
  %704 = vst.msk [vmem:[%s5 + $0x10] sm:$0xff] %vm701, %v692
  %705 = vst.msk [vmem:[%s5 + $0x18] sm:$0xff] %vm701, %v693
  %706 = vst.msk [vmem:[%s5 + $0x20] sm:$0xff] %vm701, %v694
  %707 = vst.msk [vmem:[%s5 + $0x28] sm:$0xff] %vm701, %v695
  %708 = vst.msk [vmem:[%s5 + $0x30] sm:$0xff] %vm701, %v696
  %709 = vst.msk [vmem:[%s5 + $0x38] sm:$0xff] %vm701, %v697
  %710 = vst.msk [vmem:[%s5 + $0x40] sm:$0xff] %vm701, %v698
  %711 = vst.msk [vmem:[%s5 + $0x48] sm:$0xff] %vm701, %v699
  %vm712 = vcmask 11264
  %713 = vst.msk [vmem:[%s5 + $0x50] sm:$0xf] %vm712, %v700
  // Predicated region
  $region22: #{simple_cnn_header_forward.5} parent=0 // pred_check
    _
  $region23: #{simple_cnn_header_forward.5} parent=0 // pred_check_branch
    %715 = sbr.rel (0) target = $region25
  $region24: #{simple_cnn_header_forward.5} parent=0 // pred_region
    _
  $region25: #{simple_cnn_header_forward.5} parent=0 // pred_fallthru
    _
  // Predicated region
  $region26: #{simple_cnn_header_forward.5} parent=0 // pred_check
    _
  $region27: #{simple_cnn_header_forward.5} parent=0 // pred_check_branch
    %717 = sbr.rel (0) target = $region29
  $region28: #{simple_cnn_header_forward.5} parent=0 // pred_region
    _
  $region29: #{simple_cnn_header_forward.5} parent=0 // pred_fallthru
    _

</llo_original>
